<compile_context>
chip_gen: v5e
topology: v5e:2x2
jax: 0.10.0
libtpu: 0.0.40
codegen_flags: <defaults>
</compile_context>

<pallas_src>
import functools
import math

import jax
import jax.numpy as jnp
from jax import lax
from jax.experimental import pallas as pl
from jax.experimental.pallas import tpu as pltpu


# ------------------------------------------------------------------ helpers

def _choose_tile(dim, target, align):
    """Largest multiple of `align` <= target that divides `dim`; else the full
    dim (full-dim blocks are always legal)."""
    if dim <= target:
        return dim
    t = (target // align) * align
    while t >= align:
        if dim % t == 0:
            return t
        t -= align
    return dim


def _round_up(x, m):
    return ((x + m - 1) // m) * m


# ----------------------------- fused linear (+bias / ReLU / residual + LayerNorm)

def _linear_kernel(*refs, has_bias, has_ln, relu, eps):
    """refs = (x, w, [b], [res, gamma, beta], out).

    `out` doubles as the f32 accumulator: its index_map ignores the k axis, so
    the block stays VMEM-resident across the reduction (no scratch copy).
    MXU operands are bf16 (x cast in-kernel, w stored bf16), accumulation f32.
    """
    idx = 0
    x_ref = refs[idx]; idx += 1
    w_ref = refs[idx]; idx += 1
    b_ref = None
    if has_bias:
        b_ref = refs[idx]; idx += 1
    if has_ln:
        res_ref, g_ref, beta_ref = refs[idx:idx + 3]; idx += 3
    o_ref = refs[idx]

    @pl.when(pl.program_id(2) == 0)
    def _init():
        o_ref[...] = jnp.zeros_like(o_ref)

    o_ref[...] += jnp.dot(x_ref[...].astype(jnp.bfloat16), w_ref[...],
                          preferred_element_type=jnp.float32)

    if has_bias or relu or has_ln:
        @pl.when(pl.program_id(2) == pl.num_programs(2) - 1)
        def _fin():
            y = o_ref[...]
            if has_bias:
                y = y + b_ref[...]
            if relu:
                y = jnp.maximum(y, 0.0)
            if has_ln:
                y = y + res_ref[...]
                mean = jnp.mean(y, axis=-1, keepdims=True)
                c = y - mean
                var = jnp.mean(c * c, axis=-1, keepdims=True)
                y = c * lax.rsqrt(var + eps) * g_ref[...] + beta_ref[...]
            o_ref[...] = y.astype(o_ref.dtype)


def pallas_linear(x, w, b=None, relu=False, residual=None, gamma=None, beta=None,
                  eps=1e-5, *, tm=512, tn=1024, tk=512):
    """y = x @ w (+ b) [, ReLU] [, LayerNorm(y + residual)].

    x: (M, K) f32; w: (K, O) bf16 stored (in, out); residual: (M, O) f32.
    When LayerNorm is fused the output-column tile spans the full O so the row
    statistics are computed over the whole feature dim.
    """
    M, K = x.shape
    K2, O = w.shape
    assert K == K2
    has_bias = b is not None
    has_ln = gamma is not None
    if has_ln:
        assert residual is not None and beta is not None

    tm = _choose_tile(M, tm, 8)
    tk = _choose_tile(K, tk, 128)
    tn = O if has_ln else _choose_tile(O, tn, 128)
    grid = (M // tm, O // tn, K // tk)

    in_specs = [pl.BlockSpec((tm, tk), lambda i, j, k: (i, k)),
                pl.BlockSpec((tk, tn), lambda i, j, k: (k, j))]
    args = [x, w]
    if has_bias:
        in_specs.append(pl.BlockSpec((1, tn), lambda i, j, k: (0, j)))
        args.append(jnp.asarray(b, jnp.float32).reshape(1, O))
    if has_ln:
        in_specs += [pl.BlockSpec((tm, tn), lambda i, j, k: (i, j)),
                     pl.BlockSpec((1, tn), lambda i, j, k: (0, j)),
                     pl.BlockSpec((1, tn), lambda i, j, k: (0, j))]
        args += [residual,
                 jnp.asarray(gamma, jnp.float32).reshape(1, O),
                 jnp.asarray(beta, jnp.float32).reshape(1, O)]

    kernel = functools.partial(_linear_kernel, has_bias=has_bias, has_ln=has_ln,
                               relu=relu, eps=eps)
    return pl.pallas_call(
        kernel,
        out_shape=jax.ShapeDtypeStruct((M, O), jnp.float32),
        grid=grid,
        in_specs=in_specs,
        out_specs=pl.BlockSpec((tm, tn), lambda i, j, k: (i, j)),
        compiler_params=pltpu.CompilerParams(
            dimension_semantics=("parallel", "parallel", "arbitrary"),
            vmem_limit_bytes=48 * 1024 * 1024),
    )(*args)


# --------------------------------------------------------------- attention

def _mha_core(q_src, kv_src, bias, *, heads, head_dim, q_off, k_off, v_off):
    """Multi-head attention on VMEM-resident tiles.

    q_src: (Lq, *) f32, kv_src: (Lk, *) f32. Heads are static lane slices (no
    HBM head split/merge). QK^T and PV run on the MXU in bf16 with f32
    accumulation; softmax math stays f32 (v5e has no bf16 VPU/EUP). The
    1/sqrt(embed_size) scale is pre-folded into the Q weights; the mask comes
    in as an additive bias. Returns the head-concatenated (Lq, heads*head_dim)
    tile (lane-dense).
    """
    outs = []
    for h in range(heads):
        qh = q_src[:, q_off + h * head_dim:q_off + (h + 1) * head_dim].astype(jnp.bfloat16)
        kh = kv_src[:, k_off + h * head_dim:k_off + (h + 1) * head_dim].astype(jnp.bfloat16)
        vh = kv_src[:, v_off + h * head_dim:v_off + (h + 1) * head_dim].astype(jnp.bfloat16)
        s = lax.dot_general(qh, kh, (((1,), (1,)), ((), ())),
                            preferred_element_type=jnp.float32)        # (Lq, Lk)
        s = s + bias                                                    # masked -> ~-1e30
        s = s - jnp.max(s, axis=-1, keepdims=True)
        p = jnp.exp(s)
        p = p * pl.reciprocal(jnp.sum(p, axis=-1, keepdims=True), approx=True)
        outs.append(jnp.dot(p.astype(jnp.bfloat16), vh,
                            preferred_element_type=jnp.float32))        # (Lq, Dh)
    return jnp.concatenate(outs, axis=-1)


def _self_attn_kernel(qkv_ref, m_ref, o_ref, *, heads, head_dim, embed):
    bias = jnp.where(m_ref[0, 0] == 0.0, jnp.float32(-1e30), jnp.float32(0.0))
    a = qkv_ref[0]                                                      # (L, 3E)
    o_ref[0] = _mha_core(a, a, bias, heads=heads, head_dim=head_dim,
                         q_off=0, k_off=embed, v_off=2 * embed).astype(o_ref.dtype)


def _cross_attn_kernel(q_ref, kv_ref, m_ref, o_ref, *, heads, head_dim, embed):
    bias = jnp.where(m_ref[0, 0] == 0.0, jnp.float32(-1e30), jnp.float32(0.0))
    o_ref[0] = _mha_core(q_ref[0], kv_ref[0], bias, heads=heads, head_dim=head_dim,
                         q_off=0, k_off=0, v_off=embed).astype(o_ref.dtype)


def pallas_self_attention(qkv, mask, heads, head_dim, embed):
    """qkv: (N, L, 3E) fused Q|K|V projection; mask: (N, 1, Lqm, L) f32 0/1."""
    N, L, three_e = qkv.shape
    Lqm = mask.shape[2]
    return pl.pallas_call(
        functools.partial(_self_attn_kernel, heads=heads, head_dim=head_dim, embed=embed),
        out_shape=jax.ShapeDtypeStruct((N, L, embed), jnp.float32),
        grid=(N,),
        in_specs=[pl.BlockSpec((1, L, three_e), lambda n: (n, 0, 0)),
                  pl.BlockSpec((1, 1, Lqm, L), lambda n: (n, 0, 0, 0))],
        out_specs=pl.BlockSpec((1, L, embed), lambda n: (n, 0, 0)),
        compiler_params=pltpu.CompilerParams(dimension_semantics=("parallel",)),
    )(qkv, mask)


def pallas_cross_attention(q, kv, mask, heads, head_dim, embed):
    """q: (N, Lq, E); kv: (N, Lk, 2E) fused K|V; mask: (N, 1, Lqm, Lk) f32 0/1."""
    N, Lq, E = q.shape
    Lk = kv.shape[1]
    Lqm = mask.shape[2]
    return pl.pallas_call(
        functools.partial(_cross_attn_kernel, heads=heads, head_dim=head_dim, embed=embed),
        out_shape=jax.ShapeDtypeStruct((N, Lq, embed), jnp.float32),
        grid=(N,),
        in_specs=[pl.BlockSpec((1, Lq, E), lambda n: (n, 0, 0)),
                  pl.BlockSpec((1, Lk, 2 * E), lambda n: (n, 0, 0)),
                  pl.BlockSpec((1, 1, Lqm, Lk), lambda n: (n, 0, 0, 0))],
        out_specs=pl.BlockSpec((1, Lq, embed), lambda n: (n, 0, 0)),
        compiler_params=pltpu.CompilerParams(dimension_semantics=("parallel",)),
    )(q, kv, mask)


# --------------------------------------------------------------- model glue

def decoder_block(p, x, enc_out, src_mask, trg_mask, heads, head_dim):
    N, Lq, E = x.shape
    Lk = enc_out.shape[1]
    x2d = x.reshape(-1, E)

    # masked self-attention on the target sequence (fused QKV projection);
    # wo projection fused with residual add + LayerNorm
    qkv = pallas_linear(x2d, p["self_attn"]["w_qkv"]).reshape(N, Lq, 3 * E)
    sa_ctx = pallas_self_attention(qkv, trg_mask.astype(jnp.float32),
                                   heads, head_dim, E)
    trg_q2d = pallas_linear(sa_ctx.reshape(-1, E), p["self_attn"]["wo"],
                            residual=x2d, gamma=p["norm_g"], beta=p["norm_b"])

    # cross-attention (query = target, key/value = encoder output, fused K|V);
    # wo projection fused with residual add + LayerNorm
    q = pallas_linear(trg_q2d, p["cross_attn"]["wq"]).reshape(N, Lq, E)
    kv = pallas_linear(enc_out.reshape(-1, E),
                       p["cross_attn"]["wkv"]).reshape(N, Lk, 2 * E)
    ca_ctx = pallas_cross_attention(q, kv, src_mask.astype(jnp.float32),
                                    heads, head_dim, E)
    h2d = pallas_linear(ca_ctx.reshape(-1, E), p["cross_attn"]["wo"],
                        residual=trg_q2d, gamma=p["norm1_g"], beta=p["norm1_b"])

    # feed-forward: Linear -> ReLU (fused) -> Linear fused with residual + LN
    ff = pallas_linear(h2d, p["ff_w1"], p["ff_b1"], relu=True)
    out2d = pallas_linear(ff, p["ff_w2"], p["ff_b2"],
                          residual=h2d, gamma=p["norm2_g"], beta=p["norm2_b"])
    return out2d.reshape(N, Lq, E)


def decoder_forward(params, trg_x, enc_out, src_mask, trg_mask, *,
                    embed_size, heads, vocab):
    N, L = trg_x.shape
    head_dim = embed_size // heads
    # embedding gathers left to XLA
    x = params["word_emb"][trg_x] + params["pos_emb"][:L][None, :, :]
    for lp in params["layers"]:
        x = decoder_block(lp, x, enc_out, src_mask, trg_mask, heads, head_dim)
    logits = pallas_linear(x.reshape(-1, embed_size), params["fc_w"], params["fc_b"])
    v_pad = params["fc_w"].shape[1]
    return logits.reshape(N, L, v_pad)[:, :, :vocab]


# -------------------------------------------------------------- param init
# Linear weights stored (in, out) and bf16 (MXU-native, half the weight DMA);
# biases / LayerNorm params / embeddings stay f32. The 1/sqrt(embed_size)
# attention scale (reference semantics) is folded into the Q projection
# columns. The vocab projection is zero-padded to a multiple of 128 so its
# tiles stay lane-dense (logits are sliced back to `vocab` after the matmul).

def init_params(key, vocab, E, num_layers, heads, fexp, max_len):
    w_dtype = jnp.bfloat16
    scale_q = 1.0 / math.sqrt(E)

    def nrm(k, shape, scale=0.02):
        return scale * jax.random.normal(k, shape, jnp.float32)

    keys = jax.random.split(key, 4 + num_layers)
    v_pad = _round_up(vocab, 128)
    fc_w = jnp.zeros((E, v_pad), jnp.float32).at[:, :vocab].set(nrm(keys[2], (E, vocab)))
    fc_b = jnp.zeros((v_pad,), jnp.float32).at[:vocab].set(nrm(keys[3], (vocab,)))

    params = {
        "word_emb": nrm(keys[0], (vocab, E), 1.0),
        "pos_emb": nrm(keys[1], (max_len, E), 1.0),
        "fc_w": fc_w.astype(w_dtype),
        "fc_b": fc_b,
        "layers": [],
    }

    F = fexp * E
    for li in range(num_layers):
        lk = jax.random.split(keys[4 + li], 8)
        w_q_self = nrm(lk[0], (E, E)) * scale_q            # scale folded into Q
        w_kv_self = nrm(lk[1], (E, 2 * E))
        w_q_cross = nrm(lk[3], (E, E)) * scale_q
        params["layers"].append({
            "self_attn": {
                "w_qkv": jnp.concatenate([w_q_self, w_kv_self], axis=1).astype(w_dtype),
                "wo": nrm(lk[2], (E, E)).astype(w_dtype),
            },
            "cross_attn": {
                "wq": w_q_cross.astype(w_dtype),
                "wkv": nrm(lk[4], (E, 2 * E)).astype(w_dtype),
                "wo": nrm(lk[5], (E, E)).astype(w_dtype),
            },
            "norm_g": jnp.ones((E,), jnp.float32),
            "norm_b": jnp.zeros((E,), jnp.float32),
            "norm1_g": jnp.ones((E,), jnp.float32),
            "norm1_b": jnp.zeros((E,), jnp.float32),
            "norm2_g": jnp.ones((E,), jnp.float32),
            "norm2_b": jnp.zeros((E,), jnp.float32),
            "ff_w1": nrm(lk[6], (E, F)).astype(w_dtype),
            "ff_b1": jnp.zeros((F,), jnp.float32),
            "ff_w2": nrm(lk[7], (F, E)).astype(w_dtype),
            "ff_b2": jnp.zeros((E,), jnp.float32),
        })
    return params


# --------------------------------------------------------------------- main

if __name__ == "__main__":
    key = jax.random.PRNGKey(0)
    vocab, E, num_layers, heads, fexp, max_len = 50, 32, 2, 4, 2, 16
    N, Ltrg, Lsrc = 2, 4, 8

    kp, kx, ke = jax.random.split(key, 3)
    params = init_params(kp, vocab, E, num_layers, heads, fexp, max_len)

    trg_x = jax.random.randint(kx, (N, Ltrg), 0, vocab)
    enc_out = jax.random.normal(ke, (N, Lsrc, E), jnp.float32)

    # src_mask: (N, 1, 1, Lsrc) -- padding mask from per-example source lengths
    src_lens = jnp.array([6, 8])
    src_mask = (jnp.arange(Lsrc)[None, :] < src_lens[:, None]
                ).astype(jnp.float32)[:, None, None, :]
    # trg_mask: (N, 1, Ltrg, Ltrg) -- causal lower-triangular mask
    trg_mask = jnp.broadcast_to(
        jnp.tril(jnp.ones((Ltrg, Ltrg), jnp.float32))[None, None, :, :],
        (N, 1, Ltrg, Ltrg))

    fwd = jax.jit(functools.partial(decoder_forward, embed_size=E, heads=heads,
                                    vocab=vocab))
    out = fwd(params, trg_x, enc_out, src_mask, trg_mask)
    jax.block_until_ready(out)
    assert out.shape == (N, Ltrg, vocab) and out.dtype == jnp.float32
    assert bool(jnp.all(jnp.isfinite(out)))
    print("KERNEL_OK")
</pallas_src>

<mosaic_0001>
module attributes {stable_mosaic.version = 11 : i64} {
  func.func @_self_attn_kernel(%arg0: i32, %arg1: memref<1x4x96xf32, #tpu.memory_space<vmem>>, %arg2: memref<1x1x4x4xf32, #tpu.memory_space<vmem>>, %arg3: memref<1x4x32xf32, #tpu.memory_space<vmem>>) attributes {dimension_semantics = [#tpu.dimension_semantics<parallel>], iteration_bounds = array<i64: 2>, scalar_prefetch = 0 : i64, scratch_operands = 0 : i64, tpu.core_type = #tpu.core_type<tc>, window_params = [{transform_indices = @transform_0, window_bounds = array<i64: 1, 4, 96>}, {transform_indices = @transform_1, window_bounds = array<i64: 1, 1, 4, 4>}, {transform_indices = @transform_2, window_bounds = array<i64: 1, 4, 32>}]} {
    %c0 = arith.constant 0 : index
    %c0_0 = arith.constant 0 : index
    %c0_1 = arith.constant 0 : index
    %c0_2 = arith.constant 0 : index
    %0 = vector.load %arg2[%c0, %c0_0, %c0_1, %c0_2] : memref<1x1x4x4xf32, #tpu.memory_space<vmem>>, vector<1x1x4x4xf32>
    %1 = vector.shape_cast %0 : vector<1x1x4x4xf32> to vector<4x4xf32>
    %cst = arith.constant 0.000000e+00 : f32
    %2 = vector.broadcast %cst : f32 to vector<4x4xf32>
    %3 = arith.cmpf oeq, %1, %2 : vector<4x4xf32>
    %cst_3 = arith.constant -1.000000e+30 : f32
    %cst_4 = arith.constant 0.000000e+00 : f32
    %4 = vector.broadcast %cst_3 : f32 to vector<4x4xf32>
    %5 = vector.broadcast %cst_4 : f32 to vector<4x4xf32>
    %6 = arith.select %3, %4, %5 : vector<4x4xi1>, vector<4x4xf32>
    %c0_5 = arith.constant 0 : index
    %c0_6 = arith.constant 0 : index
    %c0_7 = arith.constant 0 : index
    %7 = vector.load %arg1[%c0_5, %c0_6, %c0_7] : memref<1x4x96xf32, #tpu.memory_space<vmem>>, vector<1x4x96xf32>
    %8 = vector.shape_cast %7 : vector<1x4x96xf32> to vector<4x96xf32>
    %9 = vector.extract_strided_slice %8 {offsets = [0, 0], sizes = [4, 8], strides = [1, 1]} : vector<4x96xf32> to vector<4x8xf32>
    %10 = arith.truncf %9 : vector<4x8xf32> to vector<4x8xbf16>
    %11 = vector.extract_strided_slice %8 {offsets = [0, 32], sizes = [4, 8], strides = [1, 1]} : vector<4x96xf32> to vector<4x8xf32>
    %12 = arith.truncf %11 : vector<4x8xf32> to vector<4x8xbf16>
    %13 = vector.extract_strided_slice %8 {offsets = [0, 64], sizes = [4, 8], strides = [1, 1]} : vector<4x96xf32> to vector<4x8xf32>
    %14 = arith.truncf %13 : vector<4x8xf32> to vector<4x8xbf16>
    %cst_8 = arith.constant dense<0.000000e+00> : vector<4x4xf32>
    %15 = tpu.matmul %10, %12, %cst_8 {dimension_numbers = #tpu.dot_dimension_numbers<[1], [1], [0], [0], [0, 0, 1, 0], [], []>} : vector<4x8xbf16>, vector<4x8xbf16>, vector<4x4xf32> -> vector<4x4xf32>
    %16 = arith.addf %15, %6 : vector<4x4xf32>
    %cst_9 = arith.constant dense<0xFF800000> : vector<4xf32>
    %17 = vector.multi_reduction <maximumf>, %16, %cst_9 [1] : vector<4x4xf32> to vector<4xf32>
    %18 = vector.shape_cast %17 : vector<4xf32> to vector<4x1xf32>
    %19 = vector.broadcast %18 : vector<4x1xf32> to vector<4x4xf32>
    %20 = arith.subf %16, %19 : vector<4x4xf32>
    %21 = math.exp %20 : vector<4x4xf32>
    %cst_10 = arith.constant dense<0.000000e+00> : vector<4xf32>
    %22 = vector.multi_reduction <add>, %21, %cst_10 [1] : vector<4x4xf32> to vector<4xf32>
    %23 = vector.shape_cast %22 : vector<4xf32> to vector<4x1xf32>
    %24 = tpu.reciprocal %23 {approx = true} : vector<4x1xf32> -> vector<4x1xf32>
    %25 = vector.broadcast %24 : vector<4x1xf32> to vector<4x4xf32>
    %26 = arith.mulf %21, %25 : vector<4x4xf32>
    %27 = arith.truncf %26 : vector<4x4xf32> to vector<4x4xbf16>
    %cst_11 = arith.constant dense<0.000000e+00> : vector<4x8xf32>
    %28 = tpu.matmul %27, %14, %cst_11 {dimension_numbers = #tpu.dot_dimension_numbers<[1], [0], [0], [1], [0, 0, 1, 1], [], []>} : vector<4x4xbf16>, vector<4x8xbf16>, vector<4x8xf32> -> vector<4x8xf32>
    %29 = vector.extract_strided_slice %8 {offsets = [0, 8], sizes = [4, 8], strides = [1, 1]} : vector<4x96xf32> to vector<4x8xf32>
    %30 = arith.truncf %29 : vector<4x8xf32> to vector<4x8xbf16>
    %31 = vector.extract_strided_slice %8 {offsets = [0, 40], sizes = [4, 8], strides = [1, 1]} : vector<4x96xf32> to vector<4x8xf32>
    %32 = arith.truncf %31 : vector<4x8xf32> to vector<4x8xbf16>
    %33 = vector.extract_strided_slice %8 {offsets = [0, 72], sizes = [4, 8], strides = [1, 1]} : vector<4x96xf32> to vector<4x8xf32>
    %34 = arith.truncf %33 : vector<4x8xf32> to vector<4x8xbf16>
    %cst_12 = arith.constant dense<0.000000e+00> : vector<4x4xf32>
    %35 = tpu.matmul %30, %32, %cst_12 {dimension_numbers = #tpu.dot_dimension_numbers<[1], [1], [0], [0], [0, 0, 1, 0], [], []>} : vector<4x8xbf16>, vector<4x8xbf16>, vector<4x4xf32> -> vector<4x4xf32>
    %36 = arith.addf %35, %6 : vector<4x4xf32>
    %cst_13 = arith.constant dense<0xFF800000> : vector<4xf32>
    %37 = vector.multi_reduction <maximumf>, %36, %cst_13 [1] : vector<4x4xf32> to vector<4xf32>
    %38 = vector.shape_cast %37 : vector<4xf32> to vector<4x1xf32>
    %39 = vector.broadcast %38 : vector<4x1xf32> to vector<4x4xf32>
    %40 = arith.subf %36, %39 : vector<4x4xf32>
    %41 = math.exp %40 : vector<4x4xf32>
    %cst_14 = arith.constant dense<0.000000e+00> : vector<4xf32>
    %42 = vector.multi_reduction <add>, %41, %cst_14 [1] : vector<4x4xf32> to vector<4xf32>
    %43 = vector.shape_cast %42 : vector<4xf32> to vector<4x1xf32>
    %44 = tpu.reciprocal %43 {approx = true} : vector<4x1xf32> -> vector<4x1xf32>
    %45 = vector.broadcast %44 : vector<4x1xf32> to vector<4x4xf32>
    %46 = arith.mulf %41, %45 : vector<4x4xf32>
    %47 = arith.truncf %46 : vector<4x4xf32> to vector<4x4xbf16>
    %cst_15 = arith.constant dense<0.000000e+00> : vector<4x8xf32>
    %48 = tpu.matmul %47, %34, %cst_15 {dimension_numbers = #tpu.dot_dimension_numbers<[1], [0], [0], [1], [0, 0, 1, 1], [], []>} : vector<4x4xbf16>, vector<4x8xbf16>, vector<4x8xf32> -> vector<4x8xf32>
    %49 = vector.extract_strided_slice %8 {offsets = [0, 16], sizes = [4, 8], strides = [1, 1]} : vector<4x96xf32> to vector<4x8xf32>
    %50 = arith.truncf %49 : vector<4x8xf32> to vector<4x8xbf16>
    %51 = vector.extract_strided_slice %8 {offsets = [0, 48], sizes = [4, 8], strides = [1, 1]} : vector<4x96xf32> to vector<4x8xf32>
    %52 = arith.truncf %51 : vector<4x8xf32> to vector<4x8xbf16>
    %53 = vector.extract_strided_slice %8 {offsets = [0, 80], sizes = [4, 8], strides = [1, 1]} : vector<4x96xf32> to vector<4x8xf32>
    %54 = arith.truncf %53 : vector<4x8xf32> to vector<4x8xbf16>
    %cst_16 = arith.constant dense<0.000000e+00> : vector<4x4xf32>
    %55 = tpu.matmul %50, %52, %cst_16 {dimension_numbers = #tpu.dot_dimension_numbers<[1], [1], [0], [0], [0, 0, 1, 0], [], []>} : vector<4x8xbf16>, vector<4x8xbf16>, vector<4x4xf32> -> vector<4x4xf32>
    %56 = arith.addf %55, %6 : vector<4x4xf32>
    %cst_17 = arith.constant dense<0xFF800000> : vector<4xf32>
    %57 = vector.multi_reduction <maximumf>, %56, %cst_17 [1] : vector<4x4xf32> to vector<4xf32>
    %58 = vector.shape_cast %57 : vector<4xf32> to vector<4x1xf32>
    %59 = vector.broadcast %58 : vector<4x1xf32> to vector<4x4xf32>
    %60 = arith.subf %56, %59 : vector<4x4xf32>
    %61 = math.exp %60 : vector<4x4xf32>
    %cst_18 = arith.constant dense<0.000000e+00> : vector<4xf32>
    %62 = vector.multi_reduction <add>, %61, %cst_18 [1] : vector<4x4xf32> to vector<4xf32>
    %63 = vector.shape_cast %62 : vector<4xf32> to vector<4x1xf32>
    %64 = tpu.reciprocal %63 {approx = true} : vector<4x1xf32> -> vector<4x1xf32>
    %65 = vector.broadcast %64 : vector<4x1xf32> to vector<4x4xf32>
    %66 = arith.mulf %61, %65 : vector<4x4xf32>
    %67 = arith.truncf %66 : vector<4x4xf32> to vector<4x4xbf16>
    %cst_19 = arith.constant dense<0.000000e+00> : vector<4x8xf32>
    %68 = tpu.matmul %67, %54, %cst_19 {dimension_numbers = #tpu.dot_dimension_numbers<[1], [0], [0], [1], [0, 0, 1, 1], [], []>} : vector<4x4xbf16>, vector<4x8xbf16>, vector<4x8xf32> -> vector<4x8xf32>
    %69 = vector.extract_strided_slice %8 {offsets = [0, 24], sizes = [4, 8], strides = [1, 1]} : vector<4x96xf32> to vector<4x8xf32>
    %70 = arith.truncf %69 : vector<4x8xf32> to vector<4x8xbf16>
    %71 = vector.extract_strided_slice %8 {offsets = [0, 56], sizes = [4, 8], strides = [1, 1]} : vector<4x96xf32> to vector<4x8xf32>
    %72 = arith.truncf %71 : vector<4x8xf32> to vector<4x8xbf16>
    %73 = vector.extract_strided_slice %8 {offsets = [0, 88], sizes = [4, 8], strides = [1, 1]} : vector<4x96xf32> to vector<4x8xf32>
    %74 = arith.truncf %73 : vector<4x8xf32> to vector<4x8xbf16>
    %cst_20 = arith.constant dense<0.000000e+00> : vector<4x4xf32>
    %75 = tpu.matmul %70, %72, %cst_20 {dimension_numbers = #tpu.dot_dimension_numbers<[1], [1], [0], [0], [0, 0, 1, 0], [], []>} : vector<4x8xbf16>, vector<4x8xbf16>, vector<4x4xf32> -> vector<4x4xf32>
    %76 = arith.addf %75, %6 : vector<4x4xf32>
    %cst_21 = arith.constant dense<0xFF800000> : vector<4xf32>
    %77 = vector.multi_reduction <maximumf>, %76, %cst_21 [1] : vector<4x4xf32> to vector<4xf32>
    %78 = vector.shape_cast %77 : vector<4xf32> to vector<4x1xf32>
    %79 = vector.broadcast %78 : vector<4x1xf32> to vector<4x4xf32>
    %80 = arith.subf %76, %79 : vector<4x4xf32>
    %81 = math.exp %80 : vector<4x4xf32>
    %cst_22 = arith.constant dense<0.000000e+00> : vector<4xf32>
    %82 = vector.multi_reduction <add>, %81, %cst_22 [1] : vector<4x4xf32> to vector<4xf32>
    %83 = vector.shape_cast %82 : vector<4xf32> to vector<4x1xf32>
    %84 = tpu.reciprocal %83 {approx = true} : vector<4x1xf32> -> vector<4x1xf32>
    %85 = vector.broadcast %84 : vector<4x1xf32> to vector<4x4xf32>
    %86 = arith.mulf %81, %85 : vector<4x4xf32>
    %87 = arith.truncf %86 : vector<4x4xf32> to vector<4x4xbf16>
    %cst_23 = arith.constant dense<0.000000e+00> : vector<4x8xf32>
    %88 = tpu.matmul %87, %74, %cst_23 {dimension_numbers = #tpu.dot_dimension_numbers<[1], [0], [0], [1], [0, 0, 1, 1], [], []>} : vector<4x4xbf16>, vector<4x8xbf16>, vector<4x8xf32> -> vector<4x8xf32>
    %89 = tpu.concatenate %28, %48, %68, %88 in 1 : vector<4x8xf32>, vector<4x8xf32>, vector<4x8xf32>, vector<4x8xf32> -> vector<4x32xf32>
    %c0_24 = arith.constant 0 : index
    %c0_25 = arith.constant 0 : index
    %c0_26 = arith.constant 0 : index
    %90 = vector.load %arg3[%c0_24, %c0_25, %c0_26] : memref<1x4x32xf32, #tpu.memory_space<vmem>>, vector<1x4x32xf32>
    %91 = vector.shape_cast %90 : vector<1x4x32xf32> to vector<4x32xf32>
    %92 = vector.shape_cast %89 : vector<4x32xf32> to vector<1x4x32xf32>
    tpu.vector_store %arg3[%c0_24, %c0_25, %c0_26], %92 {strides = array<i32>} : memref<1x4x32xf32, #tpu.memory_space<vmem>>, vector<1x4x32xf32>,
    return
  }
  func.func @transform_0(%arg0: i32) -> (i32, i32, i32) {
    %c0_i32 = arith.constant 0 : i32
    %c0_i32_0 = arith.constant 0 : i32
    %c0_i32_1 = arith.constant 0 : i32
    return %arg0, %c0_i32, %c0_i32_0 : i32, i32, i32
  }
  func.func @transform_1(%arg0: i32) -> (i32, i32, i32, i32) {
    %c0_i32 = arith.constant 0 : i32
    %c0_i32_0 = arith.constant 0 : i32
    %c0_i32_1 = arith.constant 0 : i32
    %c0_i32_2 = arith.constant 0 : i32
    return %arg0, %c0_i32, %c0_i32_0, %c0_i32_1 : i32, i32, i32, i32
  }
  func.func @transform_2(%arg0: i32) -> (i32, i32, i32) {
    %c0_i32 = arith.constant 0 : i32
    %c0_i32_0 = arith.constant 0 : i32
    %c0_i32_1 = arith.constant 0 : i32
    return %arg0, %c0_i32, %c0_i32_0 : i32, i32, i32
  }
}

module attributes {stable_mosaic.version = 11 : i64} {
  func.func @_linear_kernel(%arg0: i32, %arg1: i32, %arg2: i32, %arg3: memref<8x32xf32, #tpu.memory_space<vmem>>, %arg4: memref<32x96xbf16, #tpu.memory_space<vmem>>, %arg5: memref<8x96xf32, #tpu.memory_space<vmem>>) attributes {dimension_semantics = [#tpu.dimension_semantics<parallel>, #tpu.dimension_semantics<parallel>, #tpu.dimension_semantics<arbitrary>], iteration_bounds = array<i64: 1, 1, 1>, scalar_prefetch = 0 : i64, scratch_operands = 0 : i64, tpu.core_type = #tpu.core_type<tc>, window_params = [{transform_indices = @transform_0, window_bounds = array<i64: 8, 32>}, {transform_indices = @transform_1, window_bounds = array<i64: 32, 96>}, {transform_indices = @transform_2, window_bounds = array<i64: 8, 96>}]} {
    %c0_i32 = arith.constant 0 : i32
    %0 = arith.cmpi eq, %arg2, %c0_i32 : i32
    %1 = arith.extui %0 : i1 to i32
    %c0_i32_0 = arith.constant 0 : i32
    %2 = arith.cmpi ne, %1, %c0_i32_0 : i32
    scf.if %2 {
      %cst_8 = arith.constant 0.000000e+00 : f32
      %10 = vector.broadcast %cst_8 : f32 to vector<8x96xf32>
      %c0_9 = arith.constant 0 : index
      %c0_10 = arith.constant 0 : index
      %11 = vector.load %arg5[%c0_9, %c0_10] : memref<8x96xf32, #tpu.memory_space<vmem>>, vector<8x96xf32>
      tpu.vector_store %arg5[%c0_9, %c0_10], %10 {strides = array<i32>} : memref<8x96xf32, #tpu.memory_space<vmem>>, vector<8x96xf32>,
    } else {
    }
    %c0 = arith.constant 0 : index
    %c0_1 = arith.constant 0 : index
    %3 = vector.load %arg5[%c0, %c0_1] : memref<8x96xf32, #tpu.memory_space<vmem>>, vector<8x96xf32>
    %c0_2 = arith.constant 0 : index
    %c0_3 = arith.constant 0 : index
    %4 = vector.load %arg3[%c0_2, %c0_3] : memref<8x32xf32, #tpu.memory_space<vmem>>, vector<8x32xf32>
    %5 = arith.truncf %4 : vector<8x32xf32> to vector<8x32xbf16>
    %c0_4 = arith.constant 0 : index
    %c0_5 = arith.constant 0 : index
    %6 = vector.load %arg4[%c0_4, %c0_5] : memref<32x96xbf16, #tpu.memory_space<vmem>>, vector<32x96xbf16>
    %cst = arith.constant dense<0.000000e+00> : vector<8x96xf32>
    %7 = tpu.matmul %5, %6, %cst {dimension_numbers = #tpu.dot_dimension_numbers<[1], [0], [0], [1], [0, 0, 1, 1], [], []>} : vector<8x32xbf16>, vector<32x96xbf16>, vector<8x96xf32> -> vector<8x96xf32>
    %8 = arith.addf %3, %7 : vector<8x96xf32>
    %c0_6 = arith.constant 0 : index
    %c0_7 = arith.constant 0 : index
    %9 = vector.load %arg5[%c0_6, %c0_7] : memref<8x96xf32, #tpu.memory_space<vmem>>, vector<8x96xf32>
    tpu.vector_store %arg5[%c0_6, %c0_7], %8 {strides = array<i32>} : memref<8x96xf32, #tpu.memory_space<vmem>>, vector<8x96xf32>,
    return
  }
  func.func @transform_0(%arg0: i32, %arg1: i32, %arg2: i32) -> (i32, i32) {
    %c0_i32 = arith.constant 0 : i32
    return %arg0, %arg2 : i32, i32
  }
  func.func @transform_1(%arg0: i32, %arg1: i32, %arg2: i32) -> (i32, i32) {
    %c0_i32 = arith.constant 0 : i32
    return %arg2, %arg1 : i32, i32
  }
  func.func @transform_2(%arg0: i32, %arg1: i32, %arg2: i32) -> (i32, i32) {
    %c0_i32 = arith.constant 0 : i32
    return %arg0, %arg1 : i32, i32
  }
}

module attributes {stable_mosaic.version = 11 : i64} {
  func.func @_linear_kernel(%arg0: i32, %arg1: i32, %arg2: i32, %arg3: memref<8x32xf32, #tpu.memory_space<vmem>>, %arg4: memref<32x32xbf16, #tpu.memory_space<vmem>>, %arg5: memref<8x32xf32, #tpu.memory_space<vmem>>) attributes {dimension_semantics = [#tpu.dimension_semantics<parallel>, #tpu.dimension_semantics<parallel>, #tpu.dimension_semantics<arbitrary>], iteration_bounds = array<i64: 1, 1, 1>, scalar_prefetch = 0 : i64, scratch_operands = 0 : i64, tpu.core_type = #tpu.core_type<tc>, window_params = [{transform_indices = @transform_0, window_bounds = array<i64: 8, 32>}, {transform_indices = @transform_1, window_bounds = array<i64: 32, 32>}, {transform_indices = @transform_2, window_bounds = array<i64: 8, 32>}]} {
    %c0_i32 = arith.constant 0 : i32
    %0 = arith.cmpi eq, %arg2, %c0_i32 : i32
    %1 = arith.extui %0 : i1 to i32
    %c0_i32_0 = arith.constant 0 : i32
    %2 = arith.cmpi ne, %1, %c0_i32_0 : i32
    scf.if %2 {
      %cst_8 = arith.constant 0.000000e+00 : f32
      %10 = vector.broadcast %cst_8 : f32 to vector<8x32xf32>
      %c0_9 = arith.constant 0 : index
      %c0_10 = arith.constant 0 : index
      %11 = vector.load %arg5[%c0_9, %c0_10] : memref<8x32xf32, #tpu.memory_space<vmem>>, vector<8x32xf32>
      tpu.vector_store %arg5[%c0_9, %c0_10], %10 {strides = array<i32>} : memref<8x32xf32, #tpu.memory_space<vmem>>, vector<8x32xf32>,
    } else {
    }
    %c0 = arith.constant 0 : index
    %c0_1 = arith.constant 0 : index
    %3 = vector.load %arg5[%c0, %c0_1] : memref<8x32xf32, #tpu.memory_space<vmem>>, vector<8x32xf32>
    %c0_2 = arith.constant 0 : index
    %c0_3 = arith.constant 0 : index
    %4 = vector.load %arg3[%c0_2, %c0_3] : memref<8x32xf32, #tpu.memory_space<vmem>>, vector<8x32xf32>
    %5 = arith.truncf %4 : vector<8x32xf32> to vector<8x32xbf16>
    %c0_4 = arith.constant 0 : index
    %c0_5 = arith.constant 0 : index
    %6 = vector.load %arg4[%c0_4, %c0_5] : memref<32x32xbf16, #tpu.memory_space<vmem>>, vector<32x32xbf16>
    %cst = arith.constant dense<0.000000e+00> : vector<8x32xf32>
    %7 = tpu.matmul %5, %6, %cst {dimension_numbers = #tpu.dot_dimension_numbers<[1], [0], [0], [1], [0, 0, 1, 1], [], []>} : vector<8x32xbf16>, vector<32x32xbf16>, vector<8x32xf32> -> vector<8x32xf32>
    %8 = arith.addf %3, %7 : vector<8x32xf32>
    %c0_6 = arith.constant 0 : index
    %c0_7 = arith.constant 0 : index
    %9 = vector.load %arg5[%c0_6, %c0_7] : memref<8x32xf32, #tpu.memory_space<vmem>>, vector<8x32xf32>
    tpu.vector_store %arg5[%c0_6, %c0_7], %8 {strides = array<i32>} : memref<8x32xf32, #tpu.memory_space<vmem>>, vector<8x32xf32>,
    return
  }
  func.func @transform_0(%arg0: i32, %arg1: i32, %arg2: i32) -> (i32, i32) {
    %c0_i32 = arith.constant 0 : i32
    return %arg0, %arg2 : i32, i32
  }
  func.func @transform_1(%arg0: i32, %arg1: i32, %arg2: i32) -> (i32, i32) {
    %c0_i32 = arith.constant 0 : i32
    return %arg2, %arg1 : i32, i32
  }
  func.func @transform_2(%arg0: i32, %arg1: i32, %arg2: i32) -> (i32, i32) {
    %c0_i32 = arith.constant 0 : i32
    return %arg0, %arg1 : i32, i32
  }
}

module attributes {stable_mosaic.version = 11 : i64} {
  func.func @_linear_kernel(%arg0: i32, %arg1: i32, %arg2: i32, %arg3: memref<8x32xf32, #tpu.memory_space<vmem>>, %arg4: memref<32x32xbf16, #tpu.memory_space<vmem>>, %arg5: memref<8x32xf32, #tpu.memory_space<vmem>>, %arg6: memref<1x32xf32, #tpu.memory_space<vmem>>, %arg7: memref<1x32xf32, #tpu.memory_space<vmem>>, %arg8: memref<8x32xf32, #tpu.memory_space<vmem>>) attributes {dimension_semantics = [#tpu.dimension_semantics<parallel>, #tpu.dimension_semantics<parallel>, #tpu.dimension_semantics<arbitrary>], iteration_bounds = array<i64: 1, 1, 1>, scalar_prefetch = 0 : i64, scratch_operands = 0 : i64, tpu.core_type = #tpu.core_type<tc>, window_params = [{transform_indices = @transform_0, window_bounds = array<i64: 8, 32>}, {transform_indices = @transform_1, window_bounds = array<i64: 32, 32>}, {transform_indices = @transform_2, window_bounds = array<i64: 8, 32>}, {transform_indices = @transform_3, window_bounds = array<i64: 1, 32>}, {transform_indices = @transform_4, window_bounds = array<i64: 1, 32>}, {transform_indices = @transform_5, window_bounds = array<i64: 8, 32>}]} {
    %c0_i32 = arith.constant 0 : i32
    %0 = arith.cmpi eq, %arg2, %c0_i32 : i32
    %1 = arith.extui %0 : i1 to i32
    %c0_i32_0 = arith.constant 0 : i32
    %2 = arith.cmpi ne, %1, %c0_i32_0 : i32
    scf.if %2 {
      %cst_10 = arith.constant 0.000000e+00 : f32
      %13 = vector.broadcast %cst_10 : f32 to vector<8x32xf32>
      %c0_11 = arith.constant 0 : index
      %c0_12 = arith.constant 0 : index
      %14 = vector.load %arg8[%c0_11, %c0_12] : memref<8x32xf32, #tpu.memory_space<vmem>>, vector<8x32xf32>
      tpu.vector_store %arg8[%c0_11, %c0_12], %13 {strides = array<i32>} : memref<8x32xf32, #tpu.memory_space<vmem>>, vector<8x32xf32>,
    } else {
    }
    %c0 = arith.constant 0 : index
    %c0_1 = arith.constant 0 : index
    %3 = vector.load %arg8[%c0, %c0_1] : memref<8x32xf32, #tpu.memory_space<vmem>>, vector<8x32xf32>
    %c0_2 = arith.constant 0 : index
    %c0_3 = arith.constant 0 : index
    %4 = vector.load %arg3[%c0_2, %c0_3] : memref<8x32xf32, #tpu.memory_space<vmem>>, vector<8x32xf32>
    %5 = arith.truncf %4 : vector<8x32xf32> to vector<8x32xbf16>
    %c0_4 = arith.constant 0 : index
    %c0_5 = arith.constant 0 : index
    %6 = vector.load %arg4[%c0_4, %c0_5] : memref<32x32xbf16, #tpu.memory_space<vmem>>, vector<32x32xbf16>
    %cst = arith.constant dense<0.000000e+00> : vector<8x32xf32>
    %7 = tpu.matmul %5, %6, %cst {dimension_numbers = #tpu.dot_dimension_numbers<[1], [0], [0], [1], [0, 0, 1, 1], [], []>} : vector<8x32xbf16>, vector<32x32xbf16>, vector<8x32xf32> -> vector<8x32xf32>
    %8 = arith.addf %3, %7 : vector<8x32xf32>
    %c0_6 = arith.constant 0 : index
    %c0_7 = arith.constant 0 : index
    %9 = vector.load %arg8[%c0_6, %c0_7] : memref<8x32xf32, #tpu.memory_space<vmem>>, vector<8x32xf32>
    tpu.vector_store %arg8[%c0_6, %c0_7], %8 {strides = array<i32>} : memref<8x32xf32, #tpu.memory_space<vmem>>, vector<8x32xf32>,
    %c0_i32_8 = arith.constant 0 : i32
    %10 = arith.cmpi eq, %arg2, %c0_i32_8 : i32
    %11 = arith.extui %10 : i1 to i32
    %c0_i32_9 = arith.constant 0 : i32
    %12 = arith.cmpi ne, %11, %c0_i32_9 : i32
    scf.if %12 {
      %c0_10 = arith.constant 0 : index
      %c0_11 = arith.constant 0 : index
      %13 = vector.load %arg8[%c0_10, %c0_11] : memref<8x32xf32, #tpu.memory_space<vmem>>, vector<8x32xf32>
      %c0_12 = arith.constant 0 : index
      %c0_13 = arith.constant 0 : index
      %14 = vector.load %arg5[%c0_12, %c0_13] : memref<8x32xf32, #tpu.memory_space<vmem>>, vector<8x32xf32>
      %15 = arith.addf %13, %14 : vector<8x32xf32>
      %cst_14 = arith.constant dense<0.000000e+00> : vector<8xf32>
      %16 = vector.multi_reduction <add>, %15, %cst_14 [1] : vector<8x32xf32> to vector<8xf32>
      %17 = vector.shape_cast %16 : vector<8xf32> to vector<8x1xf32>
      %cst_15 = arith.constant 3.200000e+01 : f32
      %18 = vector.broadcast %cst_15 : f32 to vector<8x1xf32>
      %19 = arith.divf %17, %18 : vector<8x1xf32>
      %20 = vector.broadcast %19 : vector<8x1xf32> to vector<8x32xf32>
      %21 = arith.subf %15, %20 : vector<8x32xf32>
      %22 = arith.mulf %21, %21 : vector<8x32xf32>
      %cst_16 = arith.constant dense<0.000000e+00> : vector<8xf32>
      %23 = vector.multi_reduction <add>, %22, %cst_16 [1] : vector<8x32xf32> to vector<8xf32>
      %24 = vector.shape_cast %23 : vector<8xf32> to vector<8x1xf32>
      %cst_17 = arith.constant 3.200000e+01 : f32
      %25 = vector.broadcast %cst_17 : f32 to vector<8x1xf32>
      %26 = arith.divf %24, %25 : vector<8x1xf32>
      %cst_18 = arith.constant 9.99999974E-6 : f32
      %27 = vector.broadcast %cst_18 : f32 to vector<8x1xf32>
      %28 = arith.addf %26, %27 : vector<8x1xf32>
      %29 = math.rsqrt %28 : vector<8x1xf32>
      %30 = vector.broadcast %29 : vector<8x1xf32> to vector<8x32xf32>
      %31 = arith.mulf %21, %30 : vector<8x32xf32>
      %c0_19 = arith.constant 0 : index
      %c0_20 = arith.constant 0 : index
      %32 = vector.load %arg6[%c0_19, %c0_20] : memref<1x32xf32, #tpu.memory_space<vmem>>, vector<1x32xf32>
      %33 = vector.broadcast %32 : vector<1x32xf32> to vector<8x32xf32>
      %34 = arith.mulf %31, %33 : vector<8x32xf32>
      %c0_21 = arith.constant 0 : index
      %c0_22 = arith.constant 0 : index
      %35 = vector.load %arg7[%c0_21, %c0_22] : memref<1x32xf32, #tpu.memory_space<vmem>>, vector<1x32xf32>
      %36 = vector.broadcast %35 : vector<1x32xf32> to vector<8x32xf32>
      %37 = arith.addf %34, %36 : vector<8x32xf32>
      %c0_23 = arith.constant 0 : index
      %c0_24 = arith.constant 0 : index
      %38 = vector.load %arg8[%c0_23, %c0_24] : memref<8x32xf32, #tpu.memory_space<vmem>>, vector<8x32xf32>
      tpu.vector_store %arg8[%c0_23, %c0_24], %37 {strides = array<i32>} : memref<8x32xf32, #tpu.memory_space<vmem>>, vector<8x32xf32>,
    } else {
    }
    return
  }
  func.func @transform_0(%arg0: i32, %arg1: i32, %arg2: i32) -> (i32, i32) {
    %c0_i32 = arith.constant 0 : i32
    return %arg0, %arg2 : i32, i32
  }
  func.func @transform_1(%arg0: i32, %arg1: i32, %arg2: i32) -> (i32, i32) {
    %c0_i32 = arith.constant 0 : i32
    return %arg2, %arg1 : i32, i32
  }
  func.func @transform_2(%arg0: i32, %arg1: i32, %arg2: i32) -> (i32, i32) {
    %c0_i32 = arith.constant 0 : i32
    return %arg0, %arg1 : i32, i32
  }
  func.func @transform_3(%arg0: i32, %arg1: i32, %arg2: i32) -> (i32, i32) {
    %c0_i32 = arith.constant 0 : i32
    %c0_i32_0 = arith.constant 0 : i32
    return %c0_i32, %arg1 : i32, i32
  }
  func.func @transform_4(%arg0: i32, %arg1: i32, %arg2: i32) -> (i32, i32) {
    %c0_i32 = arith.constant 0 : i32
    %c0_i32_0 = arith.constant 0 : i32
    return %c0_i32, %arg1 : i32, i32
  }
  func.func @transform_5(%arg0: i32, %arg1: i32, %arg2: i32) -> (i32, i32) {
    %c0_i32 = arith.constant 0 : i32
    return %arg0, %arg1 : i32, i32
  }
}

module attributes {stable_mosaic.version = 11 : i64} {
  func.func @_linear_kernel(%arg0: i32, %arg1: i32, %arg2: i32, %arg3: memref<8x32xf32, #tpu.memory_space<vmem>>, %arg4: memref<32x64xbf16, #tpu.memory_space<vmem>>, %arg5: memref<1x64xf32, #tpu.memory_space<vmem>>, %arg6: memref<8x64xf32, #tpu.memory_space<vmem>>) attributes {dimension_semantics = [#tpu.dimension_semantics<parallel>, #tpu.dimension_semantics<parallel>, #tpu.dimension_semantics<arbitrary>], iteration_bounds = array<i64: 1, 1, 1>, scalar_prefetch = 0 : i64, scratch_operands = 0 : i64, tpu.core_type = #tpu.core_type<tc>, window_params = [{transform_indices = @transform_0, window_bounds = array<i64: 8, 32>}, {transform_indices = @transform_1, window_bounds = array<i64: 32, 64>}, {transform_indices = @transform_2, window_bounds = array<i64: 1, 64>}, {transform_indices = @transform_3, window_bounds = array<i64: 8, 64>}]} {
    %c0_i32 = arith.constant 0 : i32
    %0 = arith.cmpi eq, %arg2, %c0_i32 : i32
    %1 = arith.extui %0 : i1 to i32
    %c0_i32_0 = arith.constant 0 : i32
    %2 = arith.cmpi ne, %1, %c0_i32_0 : i32
    scf.if %2 {
      %cst_10 = arith.constant 0.000000e+00 : f32
      %13 = vector.broadcast %cst_10 : f32 to vector<8x64xf32>
      %c0_11 = arith.constant 0 : index
      %c0_12 = arith.constant 0 : index
      %14 = vector.load %arg6[%c0_11, %c0_12] : memref<8x64xf32, #tpu.memory_space<vmem>>, vector<8x64xf32>
      tpu.vector_store %arg6[%c0_11, %c0_12], %13 {strides = array<i32>} : memref<8x64xf32, #tpu.memory_space<vmem>>, vector<8x64xf32>,
    } else {
    }
    %c0 = arith.constant 0 : index
    %c0_1 = arith.constant 0 : index
    %3 = vector.load %arg6[%c0, %c0_1] : memref<8x64xf32, #tpu.memory_space<vmem>>, vector<8x64xf32>
    %c0_2 = arith.constant 0 : index
    %c0_3 = arith.constant 0 : index
    %4 = vector.load %arg3[%c0_2, %c0_3] : memref<8x32xf32, #tpu.memory_space<vmem>>, vector<8x32xf32>
    %5 = arith.truncf %4 : vector<8x32xf32> to vector<8x32xbf16>
    %c0_4 = arith.constant 0 : index
    %c0_5 = arith.constant 0 : index
    %6 = vector.load %arg4[%c0_4, %c0_5] : memref<32x64xbf16, #tpu.memory_space<vmem>>, vector<32x64xbf16>
    %cst = arith.constant dense<0.000000e+00> : vector<8x64xf32>
    %7 = tpu.matmul %5, %6, %cst {dimension_numbers = #tpu.dot_dimension_numbers<[1], [0], [0], [1], [0, 0, 1, 1], [], []>} : vector<8x32xbf16>, vector<32x64xbf16>, vector<8x64xf32> -> vector<8x64xf32>
    %8 = arith.addf %3, %7 : vector<8x64xf32>
    %c0_6 = arith.constant 0 : index
    %c0_7 = arith.constant 0 : index
    %9 = vector.load %arg6[%c0_6, %c0_7] : memref<8x64xf32, #tpu.memory_space<vmem>>, vector<8x64xf32>
    tpu.vector_store %arg6[%c0_6, %c0_7], %8 {strides = array<i32>} : memref<8x64xf32, #tpu.memory_space<vmem>>, vector<8x64xf32>,
    %c0_i32_8 = arith.constant 0 : i32
    %10 = arith.cmpi eq, %arg2, %c0_i32_8 : i32
    %11 = arith.extui %10 : i1 to i32
    %c0_i32_9 = arith.constant 0 : i32
    %12 = arith.cmpi ne, %11, %c0_i32_9 : i32
    scf.if %12 {
      %c0_10 = arith.constant 0 : index
      %c0_11 = arith.constant 0 : index
      %13 = vector.load %arg6[%c0_10, %c0_11] : memref<8x64xf32, #tpu.memory_space<vmem>>, vector<8x64xf32>
      %c0_12 = arith.constant 0 : index
      %c0_13 = arith.constant 0 : index
      %14 = vector.load %arg5[%c0_12, %c0_13] : memref<1x64xf32, #tpu.memory_space<vmem>>, vector<1x64xf32>
      %15 = vector.broadcast %14 : vector<1x64xf32> to vector<8x64xf32>
      %16 = arith.addf %13, %15 : vector<8x64xf32>
      %cst_14 = arith.constant 0.000000e+00 : f32
      %17 = vector.broadcast %cst_14 : f32 to vector<8x64xf32>
      %18 = arith.maximumf %16, %17 : vector<8x64xf32>
      %c0_15 = arith.constant 0 : index
      %c0_16 = arith.constant 0 : index
      %19 = vector.load %arg6[%c0_15, %c0_16] : memref<8x64xf32, #tpu.memory_space<vmem>>, vector<8x64xf32>
      tpu.vector_store %arg6[%c0_15, %c0_16], %18 {strides = array<i32>} : memref<8x64xf32, #tpu.memory_space<vmem>>, vector<8x64xf32>,
    } else {
    }
    return
  }
  func.func @transform_0(%arg0: i32, %arg1: i32, %arg2: i32) -> (i32, i32) {
    %c0_i32 = arith.constant 0 : i32
    return %arg0, %arg2 : i32, i32
  }
  func.func @transform_1(%arg0: i32, %arg1: i32, %arg2: i32) -> (i32, i32) {
    %c0_i32 = arith.constant 0 : i32
    return %arg2, %arg1 : i32, i32
  }
  func.func @transform_2(%arg0: i32, %arg1: i32, %arg2: i32) -> (i32, i32) {
    %c0_i32 = arith.constant 0 : i32
    %c0_i32_0 = arith.constant 0 : i32
    return %c0_i32, %arg1 : i32, i32
  }
  func.func @transform_3(%arg0: i32, %arg1: i32, %arg2: i32) -> (i32, i32) {
    %c0_i32 = arith.constant 0 : i32
    return %arg0, %arg1 : i32, i32
  }
}

module attributes {stable_mosaic.version = 11 : i64} {
  func.func @_cross_attn_kernel(%arg0: i32, %arg1: memref<1x4x32xf32, #tpu.memory_space<vmem>>, %arg2: memref<1x8x64xf32, #tpu.memory_space<vmem>>, %arg3: memref<1x1x1x8xf32, #tpu.memory_space<vmem>>, %arg4: memref<1x4x32xf32, #tpu.memory_space<vmem>>) attributes {dimension_semantics = [#tpu.dimension_semantics<parallel>], iteration_bounds = array<i64: 2>, scalar_prefetch = 0 : i64, scratch_operands = 0 : i64, tpu.core_type = #tpu.core_type<tc>, window_params = [{transform_indices = @transform_0, window_bounds = array<i64: 1, 4, 32>}, {transform_indices = @transform_1, window_bounds = array<i64: 1, 8, 64>}, {transform_indices = @transform_2, window_bounds = array<i64: 1, 1, 1, 8>}, {transform_indices = @transform_3, window_bounds = array<i64: 1, 4, 32>}]} {
    %c0 = arith.constant 0 : index
    %c0_0 = arith.constant 0 : index
    %c0_1 = arith.constant 0 : index
    %c0_2 = arith.constant 0 : index
    %0 = vector.load %arg3[%c0, %c0_0, %c0_1, %c0_2] : memref<1x1x1x8xf32, #tpu.memory_space<vmem>>, vector<1x1x1x8xf32>
    %1 = vector.shape_cast %0 : vector<1x1x1x8xf32> to vector<1x8xf32>
    %cst = arith.constant 0.000000e+00 : f32
    %2 = vector.broadcast %cst : f32 to vector<1x8xf32>
    %3 = arith.cmpf oeq, %1, %2 : vector<1x8xf32>
    %cst_3 = arith.constant -1.000000e+30 : f32
    %cst_4 = arith.constant 0.000000e+00 : f32
    %4 = vector.broadcast %cst_3 : f32 to vector<1x8xf32>
    %5 = vector.broadcast %cst_4 : f32 to vector<1x8xf32>
    %6 = arith.select %3, %4, %5 : vector<1x8xi1>, vector<1x8xf32>
    %c0_5 = arith.constant 0 : index
    %c0_6 = arith.constant 0 : index
    %c0_7 = arith.constant 0 : index
    %7 = vector.load %arg1[%c0_5, %c0_6, %c0_7] : memref<1x4x32xf32, #tpu.memory_space<vmem>>, vector<1x4x32xf32>
    %8 = vector.shape_cast %7 : vector<1x4x32xf32> to vector<4x32xf32>
    %c0_8 = arith.constant 0 : index
    %c0_9 = arith.constant 0 : index
    %c0_10 = arith.constant 0 : index
    %9 = vector.load %arg2[%c0_8, %c0_9, %c0_10] : memref<1x8x64xf32, #tpu.memory_space<vmem>>, vector<1x8x64xf32>
    %10 = vector.shape_cast %9 : vector<1x8x64xf32> to vector<8x64xf32>
    %11 = vector.extract_strided_slice %8 {offsets = [0, 0], sizes = [4, 8], strides = [1, 1]} : vector<4x32xf32> to vector<4x8xf32>
    %12 = arith.truncf %11 : vector<4x8xf32> to vector<4x8xbf16>
    %13 = vector.extract_strided_slice %10 {offsets = [0, 0], sizes = [8, 8], strides = [1, 1]} : vector<8x64xf32> to vector<8x8xf32>
    %14 = arith.truncf %13 : vector<8x8xf32> to vector<8x8xbf16>
    %15 = vector.extract_strided_slice %10 {offsets = [0, 32], sizes = [8, 8], strides = [1, 1]} : vector<8x64xf32> to vector<8x8xf32>
    %16 = arith.truncf %15 : vector<8x8xf32> to vector<8x8xbf16>
    %cst_11 = arith.constant dense<0.000000e+00> : vector<4x8xf32>
    %17 = tpu.matmul %12, %14, %cst_11 {dimension_numbers = #tpu.dot_dimension_numbers<[1], [1], [0], [0], [0, 0, 1, 0], [], []>} : vector<4x8xbf16>, vector<8x8xbf16>, vector<4x8xf32> -> vector<4x8xf32>
    %18 = vector.broadcast %6 : vector<1x8xf32> to vector<4x8xf32>
    %19 = arith.addf %17, %18 : vector<4x8xf32>
    %cst_12 = arith.constant dense<0xFF800000> : vector<4xf32>
    %20 = vector.multi_reduction <maximumf>, %19, %cst_12 [1] : vector<4x8xf32> to vector<4xf32>
    %21 = vector.shape_cast %20 : vector<4xf32> to vector<4x1xf32>
    %22 = vector.broadcast %21 : vector<4x1xf32> to vector<4x8xf32>
    %23 = arith.subf %19, %22 : vector<4x8xf32>
    %24 = math.exp %23 : vector<4x8xf32>
    %cst_13 = arith.constant dense<0.000000e+00> : vector<4xf32>
    %25 = vector.multi_reduction <add>, %24, %cst_13 [1] : vector<4x8xf32> to vector<4xf32>
    %26 = vector.shape_cast %25 : vector<4xf32> to vector<4x1xf32>
    %27 = tpu.reciprocal %26 {approx = true} : vector<4x1xf32> -> vector<4x1xf32>
    %28 = vector.broadcast %27 : vector<4x1xf32> to vector<4x8xf32>
    %29 = arith.mulf %24, %28 : vector<4x8xf32>
    %30 = arith.truncf %29 : vector<4x8xf32> to vector<4x8xbf16>
    %cst_14 = arith.constant dense<0.000000e+00> : vector<4x8xf32>
    %31 = tpu.matmul %30, %16, %cst_14 {dimension_numbers = #tpu.dot_dimension_numbers<[1], [0], [0], [1], [0, 0, 1, 1], [], []>} : vector<4x8xbf16>, vector<8x8xbf16>, vector<4x8xf32> -> vector<4x8xf32>
    %32 = vector.extract_strided_slice %8 {offsets = [0, 8], sizes = [4, 8], strides = [1, 1]} : vector<4x32xf32> to vector<4x8xf32>
    %33 = arith.truncf %32 : vector<4x8xf32> to vector<4x8xbf16>
    %34 = vector.extract_strided_slice %10 {offsets = [0, 8], sizes = [8, 8], strides = [1, 1]} : vector<8x64xf32> to vector<8x8xf32>
    %35 = arith.truncf %34 : vector<8x8xf32> to vector<8x8xbf16>
    %36 = vector.extract_strided_slice %10 {offsets = [0, 40], sizes = [8, 8], strides = [1, 1]} : vector<8x64xf32> to vector<8x8xf32>
    %37 = arith.truncf %36 : vector<8x8xf32> to vector<8x8xbf16>
    %cst_15 = arith.constant dense<0.000000e+00> : vector<4x8xf32>
    %38 = tpu.matmul %33, %35, %cst_15 {dimension_numbers = #tpu.dot_dimension_numbers<[1], [1], [0], [0], [0, 0, 1, 0], [], []>} : vector<4x8xbf16>, vector<8x8xbf16>, vector<4x8xf32> -> vector<4x8xf32>
    %39 = vector.broadcast %6 : vector<1x8xf32> to vector<4x8xf32>
    %40 = arith.addf %38, %39 : vector<4x8xf32>
    %cst_16 = arith.constant dense<0xFF800000> : vector<4xf32>
    %41 = vector.multi_reduction <maximumf>, %40, %cst_16 [1] : vector<4x8xf32> to vector<4xf32>
    %42 = vector.shape_cast %41 : vector<4xf32> to vector<4x1xf32>
    %43 = vector.broadcast %42 : vector<4x1xf32> to vector<4x8xf32>
    %44 = arith.subf %40, %43 : vector<4x8xf32>
    %45 = math.exp %44 : vector<4x8xf32>
    %cst_17 = arith.constant dense<0.000000e+00> : vector<4xf32>
    %46 = vector.multi_reduction <add>, %45, %cst_17 [1] : vector<4x8xf32> to vector<4xf32>
    %47 = vector.shape_cast %46 : vector<4xf32> to vector<4x1xf32>
    %48 = tpu.reciprocal %47 {approx = true} : vector<4x1xf32> -> vector<4x1xf32>
    %49 = vector.broadcast %48 : vector<4x1xf32> to vector<4x8xf32>
    %50 = arith.mulf %45, %49 : vector<4x8xf32>
    %51 = arith.truncf %50 : vector<4x8xf32> to vector<4x8xbf16>
    %cst_18 = arith.constant dense<0.000000e+00> : vector<4x8xf32>
    %52 = tpu.matmul %51, %37, %cst_18 {dimension_numbers = #tpu.dot_dimension_numbers<[1], [0], [0], [1], [0, 0, 1, 1], [], []>} : vector<4x8xbf16>, vector<8x8xbf16>, vector<4x8xf32> -> vector<4x8xf32>
    %53 = vector.extract_strided_slice %8 {offsets = [0, 16], sizes = [4, 8], strides = [1, 1]} : vector<4x32xf32> to vector<4x8xf32>
    %54 = arith.truncf %53 : vector<4x8xf32> to vector<4x8xbf16>
    %55 = vector.extract_strided_slice %10 {offsets = [0, 16], sizes = [8, 8], strides = [1, 1]} : vector<8x64xf32> to vector<8x8xf32>
    %56 = arith.truncf %55 : vector<8x8xf32> to vector<8x8xbf16>
    %57 = vector.extract_strided_slice %10 {offsets = [0, 48], sizes = [8, 8], strides = [1, 1]} : vector<8x64xf32> to vector<8x8xf32>
    %58 = arith.truncf %57 : vector<8x8xf32> to vector<8x8xbf16>
    %cst_19 = arith.constant dense<0.000000e+00> : vector<4x8xf32>
    %59 = tpu.matmul %54, %56, %cst_19 {dimension_numbers = #tpu.dot_dimension_numbers<[1], [1], [0], [0], [0, 0, 1, 0], [], []>} : vector<4x8xbf16>, vector<8x8xbf16>, vector<4x8xf32> -> vector<4x8xf32>
    %60 = vector.broadcast %6 : vector<1x8xf32> to vector<4x8xf32>
    %61 = arith.addf %59, %60 : vector<4x8xf32>
    %cst_20 = arith.constant dense<0xFF800000> : vector<4xf32>
    %62 = vector.multi_reduction <maximumf>, %61, %cst_20 [1] : vector<4x8xf32> to vector<4xf32>
    %63 = vector.shape_cast %62 : vector<4xf32> to vector<4x1xf32>
    %64 = vector.broadcast %63 : vector<4x1xf32> to vector<4x8xf32>
    %65 = arith.subf %61, %64 : vector<4x8xf32>
    %66 = math.exp %65 : vector<4x8xf32>
    %cst_21 = arith.constant dense<0.000000e+00> : vector<4xf32>
    %67 = vector.multi_reduction <add>, %66, %cst_21 [1] : vector<4x8xf32> to vector<4xf32>
    %68 = vector.shape_cast %67 : vector<4xf32> to vector<4x1xf32>
    %69 = tpu.reciprocal %68 {approx = true} : vector<4x1xf32> -> vector<4x1xf32>
    %70 = vector.broadcast %69 : vector<4x1xf32> to vector<4x8xf32>
    %71 = arith.mulf %66, %70 : vector<4x8xf32>
    %72 = arith.truncf %71 : vector<4x8xf32> to vector<4x8xbf16>
    %cst_22 = arith.constant dense<0.000000e+00> : vector<4x8xf32>
    %73 = tpu.matmul %72, %58, %cst_22 {dimension_numbers = #tpu.dot_dimension_numbers<[1], [0], [0], [1], [0, 0, 1, 1], [], []>} : vector<4x8xbf16>, vector<8x8xbf16>, vector<4x8xf32> -> vector<4x8xf32>
    %74 = vector.extract_strided_slice %8 {offsets = [0, 24], sizes = [4, 8], strides = [1, 1]} : vector<4x32xf32> to vector<4x8xf32>
    %75 = arith.truncf %74 : vector<4x8xf32> to vector<4x8xbf16>
    %76 = vector.extract_strided_slice %10 {offsets = [0, 24], sizes = [8, 8], strides = [1, 1]} : vector<8x64xf32> to vector<8x8xf32>
    %77 = arith.truncf %76 : vector<8x8xf32> to vector<8x8xbf16>
    %78 = vector.extract_strided_slice %10 {offsets = [0, 56], sizes = [8, 8], strides = [1, 1]} : vector<8x64xf32> to vector<8x8xf32>
    %79 = arith.truncf %78 : vector<8x8xf32> to vector<8x8xbf16>
    %cst_23 = arith.constant dense<0.000000e+00> : vector<4x8xf32>
    %80 = tpu.matmul %75, %77, %cst_23 {dimension_numbers = #tpu.dot_dimension_numbers<[1], [1], [0], [0], [0, 0, 1, 0], [], []>} : vector<4x8xbf16>, vector<8x8xbf16>, vector<4x8xf32> -> vector<4x8xf32>
    %81 = vector.broadcast %6 : vector<1x8xf32> to vector<4x8xf32>
    %82 = arith.addf %80, %81 : vector<4x8xf32>
    %cst_24 = arith.constant dense<0xFF800000> : vector<4xf32>
    %83 = vector.multi_reduction <maximumf>, %82, %cst_24 [1] : vector<4x8xf32> to vector<4xf32>
    %84 = vector.shape_cast %83 : vector<4xf32> to vector<4x1xf32>
    %85 = vector.broadcast %84 : vector<4x1xf32> to vector<4x8xf32>
    %86 = arith.subf %82, %85 : vector<4x8xf32>
    %87 = math.exp %86 : vector<4x8xf32>
    %cst_25 = arith.constant dense<0.000000e+00> : vector<4xf32>
    %88 = vector.multi_reduction <add>, %87, %cst_25 [1] : vector<4x8xf32> to vector<4xf32>
    %89 = vector.shape_cast %88 : vector<4xf32> to vector<4x1xf32>
    %90 = tpu.reciprocal %89 {approx = true} : vector<4x1xf32> -> vector<4x1xf32>
    %91 = vector.broadcast %90 : vector<4x1xf32> to vector<4x8xf32>
    %92 = arith.mulf %87, %91 : vector<4x8xf32>
    %93 = arith.truncf %92 : vector<4x8xf32> to vector<4x8xbf16>
    %cst_26 = arith.constant dense<0.000000e+00> : vector<4x8xf32>
    %94 = tpu.matmul %93, %79, %cst_26 {dimension_numbers = #tpu.dot_dimension_numbers<[1], [0], [0], [1], [0, 0, 1, 1], [], []>} : vector<4x8xbf16>, vector<8x8xbf16>, vector<4x8xf32> -> vector<4x8xf32>
    %95 = tpu.concatenate %31, %52, %73, %94 in 1 : vector<4x8xf32>, vector<4x8xf32>, vector<4x8xf32>, vector<4x8xf32> -> vector<4x32xf32>
    %c0_27 = arith.constant 0 : index
    %c0_28 = arith.constant 0 : index
    %c0_29 = arith.constant 0 : index
    %96 = vector.load %arg4[%c0_27, %c0_28, %c0_29] : memref<1x4x32xf32, #tpu.memory_space<vmem>>, vector<1x4x32xf32>
    %97 = vector.shape_cast %96 : vector<1x4x32xf32> to vector<4x32xf32>
    %98 = vector.shape_cast %95 : vector<4x32xf32> to vector<1x4x32xf32>
    tpu.vector_store %arg4[%c0_27, %c0_28, %c0_29], %98 {strides = array<i32>} : memref<1x4x32xf32, #tpu.memory_space<vmem>>, vector<1x4x32xf32>,
    return
  }
  func.func @transform_0(%arg0: i32) -> (i32, i32, i32) {
    %c0_i32 = arith.constant 0 : i32
    %c0_i32_0 = arith.constant 0 : i32
    %c0_i32_1 = arith.constant 0 : i32
    return %arg0, %c0_i32, %c0_i32_0 : i32, i32, i32
  }
  func.func @transform_1(%arg0: i32) -> (i32, i32, i32) {
    %c0_i32 = arith.constant 0 : i32
    %c0_i32_0 = arith.constant 0 : i32
    %c0_i32_1 = arith.constant 0 : i32
    return %arg0, %c0_i32, %c0_i32_0 : i32, i32, i32
  }
  func.func @transform_2(%arg0: i32) -> (i32, i32, i32, i32) {
    %c0_i32 = arith.constant 0 : i32
    %c0_i32_0 = arith.constant 0 : i32
    %c0_i32_1 = arith.constant 0 : i32
    %c0_i32_2 = arith.constant 0 : i32
    return %arg0, %c0_i32, %c0_i32_0, %c0_i32_1 : i32, i32, i32, i32
  }
  func.func @transform_3(%arg0: i32) -> (i32, i32, i32) {
    %c0_i32 = arith.constant 0 : i32
    %c0_i32_0 = arith.constant 0 : i32
    %c0_i32_1 = arith.constant 0 : i32
    return %arg0, %c0_i32, %c0_i32_0 : i32, i32, i32
  }
}

module attributes {stable_mosaic.version = 11 : i64} {
  func.func @_linear_kernel(%arg0: i32, %arg1: i32, %arg2: i32, %arg3: memref<16x32xf32, #tpu.memory_space<vmem>>, %arg4: memref<32x64xbf16, #tpu.memory_space<vmem>>, %arg5: memref<16x64xf32, #tpu.memory_space<vmem>>) attributes {dimension_semantics = [#tpu.dimension_semantics<parallel>, #tpu.dimension_semantics<parallel>, #tpu.dimension_semantics<arbitrary>], iteration_bounds = array<i64: 1, 1, 1>, scalar_prefetch = 0 : i64, scratch_operands = 0 : i64, tpu.core_type = #tpu.core_type<tc>, window_params = [{transform_indices = @transform_0, window_bounds = array<i64: 16, 32>}, {transform_indices = @transform_1, window_bounds = array<i64: 32, 64>}, {transform_indices = @transform_2, window_bounds = array<i64: 16, 64>}]} {
    %c0_i32 = arith.constant 0 : i32
    %0 = arith.cmpi eq, %arg2, %c0_i32 : i32
    %1 = arith.extui %0 : i1 to i32
    %c0_i32_0 = arith.constant 0 : i32
    %2 = arith.cmpi ne, %1, %c0_i32_0 : i32
    scf.if %2 {
      %cst_8 = arith.constant 0.000000e+00 : f32
      %10 = vector.broadcast %cst_8 : f32 to vector<16x64xf32>
      %c0_9 = arith.constant 0 : index
      %c0_10 = arith.constant 0 : index
      %11 = vector.load %arg5[%c0_9, %c0_10] : memref<16x64xf32, #tpu.memory_space<vmem>>, vector<16x64xf32>
      tpu.vector_store %arg5[%c0_9, %c0_10], %10 {strides = array<i32>} : memref<16x64xf32, #tpu.memory_space<vmem>>, vector<16x64xf32>,
    } else {
    }
    %c0 = arith.constant 0 : index
    %c0_1 = arith.constant 0 : index
    %3 = vector.load %arg5[%c0, %c0_1] : memref<16x64xf32, #tpu.memory_space<vmem>>, vector<16x64xf32>
    %c0_2 = arith.constant 0 : index
    %c0_3 = arith.constant 0 : index
    %4 = vector.load %arg3[%c0_2, %c0_3] : memref<16x32xf32, #tpu.memory_space<vmem>>, vector<16x32xf32>
    %5 = arith.truncf %4 : vector<16x32xf32> to vector<16x32xbf16>
    %c0_4 = arith.constant 0 : index
    %c0_5 = arith.constant 0 : index
    %6 = vector.load %arg4[%c0_4, %c0_5] : memref<32x64xbf16, #tpu.memory_space<vmem>>, vector<32x64xbf16>
    %cst = arith.constant dense<0.000000e+00> : vector<16x64xf32>
    %7 = tpu.matmul %5, %6, %cst {dimension_numbers = #tpu.dot_dimension_numbers<[1], [0], [0], [1], [0, 0, 1, 1], [], []>} : vector<16x32xbf16>, vector<32x64xbf16>, vector<16x64xf32> -> vector<16x64xf32>
    %8 = arith.addf %3, %7 : vector<16x64xf32>
    %c0_6 = arith.constant 0 : index
    %c0_7 = arith.constant 0 : index
    %9 = vector.load %arg5[%c0_6, %c0_7] : memref<16x64xf32, #tpu.memory_space<vmem>>, vector<16x64xf32>
    tpu.vector_store %arg5[%c0_6, %c0_7], %8 {strides = array<i32>} : memref<16x64xf32, #tpu.memory_space<vmem>>, vector<16x64xf32>,
    return
  }
  func.func @transform_0(%arg0: i32, %arg1: i32, %arg2: i32) -> (i32, i32) {
    %c0_i32 = arith.constant 0 : i32
    return %arg0, %arg2 : i32, i32
  }
  func.func @transform_1(%arg0: i32, %arg1: i32, %arg2: i32) -> (i32, i32) {
    %c0_i32 = arith.constant 0 : i32
    return %arg2, %arg1 : i32, i32
  }
  func.func @transform_2(%arg0: i32, %arg1: i32, %arg2: i32) -> (i32, i32) {
    %c0_i32 = arith.constant 0 : i32
    return %arg0, %arg1 : i32, i32
  }
}

module attributes {stable_mosaic.version = 11 : i64} {
  func.func @_linear_kernel(%arg0: i32, %arg1: i32, %arg2: i32, %arg3: memref<8x64xf32, #tpu.memory_space<vmem>>, %arg4: memref<64x32xbf16, #tpu.memory_space<vmem>>, %arg5: memref<1x32xf32, #tpu.memory_space<vmem>>, %arg6: memref<8x32xf32, #tpu.memory_space<vmem>>, %arg7: memref<1x32xf32, #tpu.memory_space<vmem>>, %arg8: memref<1x32xf32, #tpu.memory_space<vmem>>, %arg9: memref<8x32xf32, #tpu.memory_space<vmem>>) attributes {dimension_semantics = [#tpu.dimension_semantics<parallel>, #tpu.dimension_semantics<parallel>, #tpu.dimension_semantics<arbitrary>], iteration_bounds = array<i64: 1, 1, 1>, scalar_prefetch = 0 : i64, scratch_operands = 0 : i64, tpu.core_type = #tpu.core_type<tc>, window_params = [{transform_indices = @transform_0, window_bounds = array<i64: 8, 64>}, {transform_indices = @transform_1, window_bounds = array<i64: 64, 32>}, {transform_indices = @transform_2, window_bounds = array<i64: 1, 32>}, {transform_indices = @transform_3, window_bounds = array<i64: 8, 32>}, {transform_indices = @transform_4, window_bounds = array<i64: 1, 32>}, {transform_indices = @transform_5, window_bounds = array<i64: 1, 32>}, {transform_indices = @transform_6, window_bounds = array<i64: 8, 32>}]} {
    %c0_i32 = arith.constant 0 : i32
    %0 = arith.cmpi eq, %arg2, %c0_i32 : i32
    %1 = arith.extui %0 : i1 to i32
    %c0_i32_0 = arith.constant 0 : i32
    %2 = arith.cmpi ne, %1, %c0_i32_0 : i32
    scf.if %2 {
      %cst_10 = arith.constant 0.000000e+00 : f32
      %13 = vector.broadcast %cst_10 : f32 to vector<8x32xf32>
      %c0_11 = arith.constant 0 : index
      %c0_12 = arith.constant 0 : index
      %14 = vector.load %arg9[%c0_11, %c0_12] : memref<8x32xf32, #tpu.memory_space<vmem>>, vector<8x32xf32>
      tpu.vector_store %arg9[%c0_11, %c0_12], %13 {strides = array<i32>} : memref<8x32xf32, #tpu.memory_space<vmem>>, vector<8x32xf32>,
    } else {
    }
    %c0 = arith.constant 0 : index
    %c0_1 = arith.constant 0 : index
    %3 = vector.load %arg9[%c0, %c0_1] : memref<8x32xf32, #tpu.memory_space<vmem>>, vector<8x32xf32>
    %c0_2 = arith.constant 0 : index
    %c0_3 = arith.constant 0 : index
    %4 = vector.load %arg3[%c0_2, %c0_3] : memref<8x64xf32, #tpu.memory_space<vmem>>, vector<8x64xf32>
    %5 = arith.truncf %4 : vector<8x64xf32> to vector<8x64xbf16>
    %c0_4 = arith.constant 0 : index
    %c0_5 = arith.constant 0 : index
    %6 = vector.load %arg4[%c0_4, %c0_5] : memref<64x32xbf16, #tpu.memory_space<vmem>>, vector<64x32xbf16>
    %cst = arith.constant dense<0.000000e+00> : vector<8x32xf32>
    %7 = tpu.matmul %5, %6, %cst {dimension_numbers = #tpu.dot_dimension_numbers<[1], [0], [0], [1], [0, 0, 1, 1], [], []>} : vector<8x64xbf16>, vector<64x32xbf16>, vector<8x32xf32> -> vector<8x32xf32>
    %8 = arith.addf %3, %7 : vector<8x32xf32>
    %c0_6 = arith.constant 0 : index
    %c0_7 = arith.constant 0 : index
    %9 = vector.load %arg9[%c0_6, %c0_7] : memref<8x32xf32, #tpu.memory_space<vmem>>, vector<8x32xf32>
    tpu.vector_store %arg9[%c0_6, %c0_7], %8 {strides = array<i32>} : memref<8x32xf32, #tpu.memory_space<vmem>>, vector<8x32xf32>,
    %c0_i32_8 = arith.constant 0 : i32
    %10 = arith.cmpi eq, %arg2, %c0_i32_8 : i32
    %11 = arith.extui %10 : i1 to i32
    %c0_i32_9 = arith.constant 0 : i32
    %12 = arith.cmpi ne, %11, %c0_i32_9 : i32
    scf.if %12 {
      %c0_10 = arith.constant 0 : index
      %c0_11 = arith.constant 0 : index
      %13 = vector.load %arg9[%c0_10, %c0_11] : memref<8x32xf32, #tpu.memory_space<vmem>>, vector<8x32xf32>
      %c0_12 = arith.constant 0 : index
      %c0_13 = arith.constant 0 : index
      %14 = vector.load %arg5[%c0_12, %c0_13] : memref<1x32xf32, #tpu.memory_space<vmem>>, vector<1x32xf32>
      %15 = vector.broadcast %14 : vector<1x32xf32> to vector<8x32xf32>
      %16 = arith.addf %13, %15 : vector<8x32xf32>
      %c0_14 = arith.constant 0 : index
      %c0_15 = arith.constant 0 : index
      %17 = vector.load %arg6[%c0_14, %c0_15] : memref<8x32xf32, #tpu.memory_space<vmem>>, vector<8x32xf32>
      %18 = arith.addf %16, %17 : vector<8x32xf32>
      %cst_16 = arith.constant dense<0.000000e+00> : vector<8xf32>
      %19 = vector.multi_reduction <add>, %18, %cst_16 [1] : vector<8x32xf32> to vector<8xf32>
      %20 = vector.shape_cast %19 : vector<8xf32> to vector<8x1xf32>
      %cst_17 = arith.constant 3.200000e+01 : f32
      %21 = vector.broadcast %cst_17 : f32 to vector<8x1xf32>
      %22 = arith.divf %20, %21 : vector<8x1xf32>
      %23 = vector.broadcast %22 : vector<8x1xf32> to vector<8x32xf32>
      %24 = arith.subf %18, %23 : vector<8x32xf32>
      %25 = arith.mulf %24, %24 : vector<8x32xf32>
      %cst_18 = arith.constant dense<0.000000e+00> : vector<8xf32>
      %26 = vector.multi_reduction <add>, %25, %cst_18 [1] : vector<8x32xf32> to vector<8xf32>
      %27 = vector.shape_cast %26 : vector<8xf32> to vector<8x1xf32>
      %cst_19 = arith.constant 3.200000e+01 : f32
      %28 = vector.broadcast %cst_19 : f32 to vector<8x1xf32>
      %29 = arith.divf %27, %28 : vector<8x1xf32>
      %cst_20 = arith.constant 9.99999974E-6 : f32
      %30 = vector.broadcast %cst_20 : f32 to vector<8x1xf32>
      %31 = arith.addf %29, %30 : vector<8x1xf32>
      %32 = math.rsqrt %31 : vector<8x1xf32>
      %33 = vector.broadcast %32 : vector<8x1xf32> to vector<8x32xf32>
      %34 = arith.mulf %24, %33 : vector<8x32xf32>
      %c0_21 = arith.constant 0 : index
      %c0_22 = arith.constant 0 : index
      %35 = vector.load %arg7[%c0_21, %c0_22] : memref<1x32xf32, #tpu.memory_space<vmem>>, vector<1x32xf32>
      %36 = vector.broadcast %35 : vector<1x32xf32> to vector<8x32xf32>
      %37 = arith.mulf %34, %36 : vector<8x32xf32>
      %c0_23 = arith.constant 0 : index
      %c0_24 = arith.constant 0 : index
      %38 = vector.load %arg8[%c0_23, %c0_24] : memref<1x32xf32, #tpu.memory_space<vmem>>, vector<1x32xf32>
      %39 = vector.broadcast %38 : vector<1x32xf32> to vector<8x32xf32>
      %40 = arith.addf %37, %39 : vector<8x32xf32>
      %c0_25 = arith.constant 0 : index
      %c0_26 = arith.constant 0 : index
      %41 = vector.load %arg9[%c0_25, %c0_26] : memref<8x32xf32, #tpu.memory_space<vmem>>, vector<8x32xf32>
      tpu.vector_store %arg9[%c0_25, %c0_26], %40 {strides = array<i32>} : memref<8x32xf32, #tpu.memory_space<vmem>>, vector<8x32xf32>,
    } else {
    }
    return
  }
  func.func @transform_0(%arg0: i32, %arg1: i32, %arg2: i32) -> (i32, i32) {
    %c0_i32 = arith.constant 0 : i32
    return %arg0, %arg2 : i32, i32
  }
  func.func @transform_1(%arg0: i32, %arg1: i32, %arg2: i32) -> (i32, i32) {
    %c0_i32 = arith.constant 0 : i32
    return %arg2, %arg1 : i32, i32
  }
  func.func @transform_2(%arg0: i32, %arg1: i32, %arg2: i32) -> (i32, i32) {
    %c0_i32 = arith.constant 0 : i32
    %c0_i32_0 = arith.constant 0 : i32
    return %c0_i32, %arg1 : i32, i32
  }
  func.func @transform_3(%arg0: i32, %arg1: i32, %arg2: i32) -> (i32, i32) {
    %c0_i32 = arith.constant 0 : i32
    return %arg0, %arg1 : i32, i32
  }
  func.func @transform_4(%arg0: i32, %arg1: i32, %arg2: i32) -> (i32, i32) {
    %c0_i32 = arith.constant 0 : i32
    %c0_i32_0 = arith.constant 0 : i32
    return %c0_i32, %arg1 : i32, i32
  }
  func.func @transform_5(%arg0: i32, %arg1: i32, %arg2: i32) -> (i32, i32) {
    %c0_i32 = arith.constant 0 : i32
    %c0_i32_0 = arith.constant 0 : i32
    return %c0_i32, %arg1 : i32, i32
  }
  func.func @transform_6(%arg0: i32, %arg1: i32, %arg2: i32) -> (i32, i32) {
    %c0_i32 = arith.constant 0 : i32
    return %arg0, %arg1 : i32, i32
  }
}

module attributes {stable_mosaic.version = 11 : i64} {
  func.func @_linear_kernel(%arg0: i32, %arg1: i32, %arg2: i32, %arg3: memref<8x32xf32, #tpu.memory_space<vmem>>, %arg4: memref<32x128xbf16, #tpu.memory_space<vmem>>, %arg5: memref<1x128xf32, #tpu.memory_space<vmem>>, %arg6: memref<8x128xf32, #tpu.memory_space<vmem>>) attributes {dimension_semantics = [#tpu.dimension_semantics<parallel>, #tpu.dimension_semantics<parallel>, #tpu.dimension_semantics<arbitrary>], iteration_bounds = array<i64: 1, 1, 1>, scalar_prefetch = 0 : i64, scratch_operands = 0 : i64, tpu.core_type = #tpu.core_type<tc>, window_params = [{transform_indices = @transform_0, window_bounds = array<i64: 8, 32>}, {transform_indices = @transform_1, window_bounds = array<i64: 32, 128>}, {transform_indices = @transform_2, window_bounds = array<i64: 1, 128>}, {transform_indices = @transform_3, window_bounds = array<i64: 8, 128>}]} {
    %c0_i32 = arith.constant 0 : i32
    %0 = arith.cmpi eq, %arg2, %c0_i32 : i32
    %1 = arith.extui %0 : i1 to i32
    %c0_i32_0 = arith.constant 0 : i32
    %2 = arith.cmpi ne, %1, %c0_i32_0 : i32
    scf.if %2 {
      %cst_10 = arith.constant 0.000000e+00 : f32
      %13 = vector.broadcast %cst_10 : f32 to vector<8x128xf32>
      %c0_11 = arith.constant 0 : index
      %c0_12 = arith.constant 0 : index
      %14 = vector.load %arg6[%c0_11, %c0_12] : memref<8x128xf32, #tpu.memory_space<vmem>>, vector<8x128xf32>
      tpu.vector_store %arg6[%c0_11, %c0_12], %13 {strides = array<i32>} : memref<8x128xf32, #tpu.memory_space<vmem>>, vector<8x128xf32>,
    } else {
    }
    %c0 = arith.constant 0 : index
    %c0_1 = arith.constant 0 : index
    %3 = vector.load %arg6[%c0, %c0_1] : memref<8x128xf32, #tpu.memory_space<vmem>>, vector<8x128xf32>
    %c0_2 = arith.constant 0 : index
    %c0_3 = arith.constant 0 : index
    %4 = vector.load %arg3[%c0_2, %c0_3] : memref<8x32xf32, #tpu.memory_space<vmem>>, vector<8x32xf32>
    %5 = arith.truncf %4 : vector<8x32xf32> to vector<8x32xbf16>
    %c0_4 = arith.constant 0 : index
    %c0_5 = arith.constant 0 : index
    %6 = vector.load %arg4[%c0_4, %c0_5] : memref<32x128xbf16, #tpu.memory_space<vmem>>, vector<32x128xbf16>
    %cst = arith.constant dense<0.000000e+00> : vector<8x128xf32>
    %7 = tpu.matmul %5, %6, %cst {dimension_numbers = #tpu.dot_dimension_numbers<[1], [0], [0], [1], [0, 0, 1, 1], [], []>} : vector<8x32xbf16>, vector<32x128xbf16>, vector<8x128xf32> -> vector<8x128xf32>
    %8 = arith.addf %3, %7 : vector<8x128xf32>
    %c0_6 = arith.constant 0 : index
    %c0_7 = arith.constant 0 : index
    %9 = vector.load %arg6[%c0_6, %c0_7] : memref<8x128xf32, #tpu.memory_space<vmem>>, vector<8x128xf32>
    tpu.vector_store %arg6[%c0_6, %c0_7], %8 {strides = array<i32>} : memref<8x128xf32, #tpu.memory_space<vmem>>, vector<8x128xf32>,
    %c0_i32_8 = arith.constant 0 : i32
    %10 = arith.cmpi eq, %arg2, %c0_i32_8 : i32
    %11 = arith.extui %10 : i1 to i32
    %c0_i32_9 = arith.constant 0 : i32
    %12 = arith.cmpi ne, %11, %c0_i32_9 : i32
    scf.if %12 {
      %c0_10 = arith.constant 0 : index
      %c0_11 = arith.constant 0 : index
      %13 = vector.load %arg6[%c0_10, %c0_11] : memref<8x128xf32, #tpu.memory_space<vmem>>, vector<8x128xf32>
      %c0_12 = arith.constant 0 : index
      %c0_13 = arith.constant 0 : index
      %14 = vector.load %arg5[%c0_12, %c0_13] : memref<1x128xf32, #tpu.memory_space<vmem>>, vector<1x128xf32>
      %15 = vector.broadcast %14 : vector<1x128xf32> to vector<8x128xf32>
      %16 = arith.addf %13, %15 : vector<8x128xf32>
      %c0_14 = arith.constant 0 : index
      %c0_15 = arith.constant 0 : index
      %17 = vector.load %arg6[%c0_14, %c0_15] : memref<8x128xf32, #tpu.memory_space<vmem>>, vector<8x128xf32>
      tpu.vector_store %arg6[%c0_14, %c0_15], %16 {strides = array<i32>} : memref<8x128xf32, #tpu.memory_space<vmem>>, vector<8x128xf32>,
    } else {
    }
    return
  }
  func.func @transform_0(%arg0: i32, %arg1: i32, %arg2: i32) -> (i32, i32) {
    %c0_i32 = arith.constant 0 : i32
    return %arg0, %arg2 : i32, i32
  }
  func.func @transform_1(%arg0: i32, %arg1: i32, %arg2: i32) -> (i32, i32) {
    %c0_i32 = arith.constant 0 : i32
    return %arg2, %arg1 : i32, i32
  }
  func.func @transform_2(%arg0: i32, %arg1: i32, %arg2: i32) -> (i32, i32) {
    %c0_i32 = arith.constant 0 : i32
    %c0_i32_0 = arith.constant 0 : i32
    return %c0_i32, %arg1 : i32, i32
  }
  func.func @transform_3(%arg0: i32, %arg1: i32, %arg2: i32) -> (i32, i32) {
    %c0_i32 = arith.constant 0 : i32
    return %arg0, %arg1 : i32, i32
  }
}

</mosaic_0001>

<llo_original>
// kernel: decoder_forward.20
$region0: #{decoder_forward.20}
  #allocation0 [shape = 'u32[]', space=smem, size = 0x4, offset = 0x4, fixed_abs, tag = 'smem constant byte address 0x4 - core index']
  #allocation1 [shape = 'u32[72,128]{1,0:T(1,128)}', space=vmem, size = 0x9000, scoped, tag = 'internal scratch']
  %s0 = inlined_call_operand.vmem [shape: f32[2,4,96], index: 0, kind: input, shape index: {}]
  %s1 = inlined_call_operand.vmem [shape: f32[2,1,4,4], index: 1, kind: input, shape index: {}]
  %s2 = inlined_call_operand.vmem [shape: f32[2,4,32], index: 2, kind: output, shape index: {}]
  %s3 = sld [smem:[#allocation0]]
  $region41: #{decoder_forward.20} parent=0
    _
  %s5 = ssub.s32 1, %s3
  %s6 = scalar_select 0, %s5, %s3
  loop: start=0, step=1, limit=4
  $region2: #{decoder_forward.20} parent=0 // loop_pre_header
    _
  $region3: #{decoder_forward.20} parent=0 // loop_header
    %s8 = sphi 0, %s12
    %p9 = scmp.ge.s32.totalorder %s8, 4
    %s18 = sphi 0, %s20
    %s21 = sphi 0, %s18
    %s22 = sphi 0, %s21
    %s38 = sphi 0, %s22
    %s44 = sphi 0, %s46
    %s47 = sphi 0, %s44
    %s48 = sphi 0, %s47
    %s64 = sphi 0, %s48
    %s70 = sphi 0, %s72
    %s73 = sphi 0, %s70
    %s74 = sphi 0, %s73
    %s90 = sphi 0, %s74
  $region4: #{decoder_forward.20} parent=0 // loop_header_branch
    %11 = sbr.rel (%p9) target = $region8
  $region5: #{decoder_forward.20} parent=0 // loop_body
    %s13 = ssub.s32 %s8, 1
    %s14 = ssub.s32 %s8, 2
    %s15 = sadd.s32 %s8, 1
    %s16 = ssub.s32 %s8, %s15
    %p17 = scmp.eq.s32.totalorder %s16, 0
    %s19 = sadd.s32 %s18, 1
    %s20 = scalar_select %p17, %s18, %s19
    %p23 = pneg %p17
    %p24 = scmp.eq.s32.totalorder %s8, 1
    %p25 = por %p23, %p24
    %p26 = scmp.ne.s32.totalorder %s18, %s21
    %p27 = scmp.eq.s32.totalorder %s8, 0
    %p28 = por %p26, %p27
    %p29 = scmp.ne.s32.totalorder %s18, %s21
    %p30 = scmp.eq.s32.totalorder %s13, 1
    %p31 = por %p29, %p30
    %p32 = scmp.ne.s32.totalorder %s21, %s22
    %p33 = scmp.eq.s32.totalorder %s13, 0
    %p34 = por %p32, %p33
    %p35 = scmp.ne.s32.totalorder %s21, %s22
    %p36 = scmp.eq.s32.totalorder %s14, 1
    %p37 = por %p35, %p36
    %p39 = scmp.ne.s32.totalorder %s22, %s38
    %p40 = scmp.eq.s32.totalorder %s14, 0
    %p41 = por %p39, %p40
    %s42 = ssub.s32 %s8, %s15
    %p43 = scmp.eq.s32.totalorder %s42, 0
    %s45 = sadd.s32 %s44, 1
    %s46 = scalar_select %p43, %s44, %s45
    %p49 = pneg %p43
    %p50 = scmp.eq.s32.totalorder %s8, 1
    %p51 = por %p49, %p50
    %p52 = scmp.ne.s32.totalorder %s44, %s47
    %p53 = scmp.eq.s32.totalorder %s8, 0
    %p54 = por %p52, %p53
    %p55 = scmp.ne.s32.totalorder %s44, %s47
    %p56 = scmp.eq.s32.totalorder %s13, 1
    %p57 = por %p55, %p56
    %p58 = scmp.ne.s32.totalorder %s47, %s48
    %p59 = scmp.eq.s32.totalorder %s13, 0
    %p60 = por %p58, %p59
    %p61 = scmp.ne.s32.totalorder %s47, %s48
    %p62 = scmp.eq.s32.totalorder %s14, 1
    %p63 = por %p61, %p62
    %p65 = scmp.ne.s32.totalorder %s48, %s64
    %p66 = scmp.eq.s32.totalorder %s14, 0
    %p67 = por %p65, %p66
    %s68 = ssub.s32 %s8, %s15
    %p69 = scmp.eq.s32.totalorder %s68, 0
    %s71 = sadd.s32 %s70, 1
    %s72 = scalar_select %p69, %s70, %s71
    %p75 = pneg %p69
    %p76 = scmp.eq.s32.totalorder %s8, 1
    %p77 = por %p75, %p76
    %p78 = scmp.ne.s32.totalorder %s70, %s73
    %p79 = scmp.eq.s32.totalorder %s8, 0
    %p80 = por %p78, %p79
    %p81 = scmp.ne.s32.totalorder %s70, %s73
    %p82 = scmp.eq.s32.totalorder %s13, 1
    %p83 = por %p81, %p82
    %p84 = scmp.ne.s32.totalorder %s73, %s74
    %p85 = scmp.eq.s32.totalorder %s13, 0
    %p86 = por %p84, %p85
    %p87 = scmp.ne.s32.totalorder %s73, %s74
    %p88 = scmp.eq.s32.totalorder %s14, 1
    %p89 = por %p87, %p88
    %p91 = scmp.ne.s32.totalorder %s74, %s90
    %p92 = scmp.eq.s32.totalorder %s14, 0
    %p93 = por %p91, %p92
    %p94 = scmp.le.s32.totalorder 1, %s8
    %p95 = scmp.lt.s32.totalorder %s8, 3
    %p96 = pnand %p94, %p95
    %p97 = pneg %p96
    // Predicated region
    $region9: #{decoder_forward.20} parent=5 // pred_check
      _
    $region10: #{decoder_forward.20} parent=5 // pred_check_branch
      %99 = sbr.rel (%p96) target = $region12
    $region11: #{decoder_forward.20} parent=5 // pred_region
      %s100 = ssub.s32 %s8, 1
    $region12: #{decoder_forward.20} parent=5 // pred_fallthru
      _
    %p101 = scmp.lt.s32.totalorder %s8, 2
    // Predicated region
    $region13: #{decoder_forward.20} parent=5 // pred_check
      %p102 = pneg %p101
    $region14: #{decoder_forward.20} parent=5 // pred_check_branch
      %104 = sbr.rel (%p102) target = $region16
    $region15: #{decoder_forward.20} parent=5 // pred_region
      // Predicated region
      $region17: #{decoder_forward.20} parent=15 // pred_check
        %p105 = pneg %p28
      $region18: #{decoder_forward.20} parent=15 // pred_check_branch
        %107 = sbr.rel (%p105) target = $region20
      $region19: #{decoder_forward.20} parent=15 // pred_region
        %p108 = scmp.lt.s32.totalorder %s8, 1
        %s109 = scalar_select %p108, %s8, 1
        %s110 = smul.addr %s109, 4
        %s111 = scalar_lea.vmem %s0, %s110
      $region20: #{decoder_forward.20} parent=15 // pred_fallthru
        _
      // Predicated region
      $region21: #{decoder_forward.20} parent=15 // pred_check
        %p112 = pneg %p54
      $region22: #{decoder_forward.20} parent=15 // pred_check_branch
        %114 = sbr.rel (%p112) target = $region24
      $region23: #{decoder_forward.20} parent=15 // pred_region
        %p115 = scmp.lt.s32.totalorder %s8, 1
        %s116 = scalar_select %p115, %s8, 1
        %s117 = smul.addr %s116, 4
        %s118 = scalar_lea.vmem %s1, %s117
      $region24: #{decoder_forward.20} parent=15 // pred_fallthru
        _
    $region16: #{decoder_forward.20} parent=5 // pred_fallthru
      _
    %p119 = scmp.le.s32.totalorder 1, %s8
    %p120 = scmp.lt.s32.totalorder %s8, 3
    %p121 = pnand %p119, %p120
    %p122 = pneg %p121
    // Predicated region
    $region25: #{decoder_forward.20} parent=5 // pred_check
      _
    $region26: #{decoder_forward.20} parent=5 // pred_check_branch
      %124 = sbr.rel (%p121) target = $region28
    $region27: #{decoder_forward.20} parent=5 // pred_region
      %s125 = ssub.s32 %s8, 1
      %p126 = scmp.lt.s32.totalorder %s13, 1
      %s127 = scalar_select %p126, %s13, 1
      %s128 = smul.addr %s127, 4
      %s129 = scalar_lea.vmem %s0, %s128
      %p130 = pneg %p34
      %p131 = pneg %p31
      %p132 = scmp.lt.s32.totalorder %s13, 1
      %s133 = scalar_select %p132, %s13, 1
      %s134 = smul.addr %s133, 4
      %s135 = scalar_lea.vmem %s1, %s134
      %p136 = pneg %p60
      %p137 = pneg %p57
      %p138 = pneg %p86
      %p139 = pneg %p83
      %p140 = scmp.lt.s32.totalorder %s13, 1
      %s141 = scalar_select %p140, %s13, 1
      %s142 = smul.addr %s141, 4
      %s143 = scalar_lea.vmem %s2, %s142
      %p144 = scmp.lt.s32.totalorder %s13, 1
      %s145 = scalar_select %p144, %s13, 1
      %s146 = smul.addr %s145, 4
      %s147 = scalar_lea.vmem %s0, %s146
      %p148 = scmp.lt.s32.totalorder %s13, 1
      %s149 = scalar_select %p148, %s13, 1
      %s150 = smul.addr %s149, 4
      %s151 = scalar_lea.vmem %s1, %s150
      %p152 = scmp.lt.s32.totalorder %s13, 1
      %s153 = scalar_select %p152, %s13, 1
      %s154 = smul.addr %s153, 4
      %s155 = scalar_lea.vmem %s2, %s154
      %v157 = vld [vmem:[%s151] sm:$0xf]
      %vm158 = vcmp.eq.f32.partialorder %v157, 0.0
      %v159 = vsel %vm158, -1e+30, 0.0
      %v160 = vld [vmem:[%s147] sm:$0xf]
      %v161 = vpack.c.bf16 %v160, %v160
      %163 = vrot.lane.b32.xlu0 %v161, 96
      %v164 = vpop.permute.xlu0 %163
      %vm165 = vcmask 64512
      %v167 = vsel %vm165, %v161, 0
      %v170 = vsel %vm165, %v164, 0
      %172 = vmatpush.bf16.xpose.msra.mxu0 0
      %173 = vmatpush.bf16.xpose.msra.mxu0 0
      %174 = vmatpush.bf16.xpose.msra.mxu0 0
      %175 = vmatpush.bf16.xpose.msra.mxu0 0
      %176 = vmatpush.bf16.xpose.msra.mxu0 0
      %177 = vmatpush.bf16.xpose.msra.mxu0 0
      %178 = vmatpush.bf16.xpose.msra.mxu0 0
      %179 = vmatpush.bf16.xpose.msra.mxu0 %v170
      %180 = vmatmul.bf16.gmra.mxu0 %v167
      %v181 = vpop.f32.mrf.mxu0
      %v182 = vadd.f32 %v159, %v181
      %v183 = vpop.f32.mrf.mxu0
      %184 = vdwg.mxu0
      %vm185 = vcmask 27648
      %v186 = vsel %vm185, %v182, -inf
      %187 = vmax.xlane.f32.xlu0 %v186
      %v188 = vpop.xlane.xlu0 %187
      %v189 = vsub.f32 %v182, %v188
      %v190 = vmul.f32 %v189, 1.442695
      %v191 = vpow.pop %v190
      %v192 = vsel %vm185, %v191, 0.0
      %193 = vadd.xlane.f32.xlu0 %v192
      %v194 = vpop.xlane.xlu0 %193
      %v195 = vrcp.pop %v194
      %v196 = vmul.f32 %v191, %v195
      %v197 = vpack.c.bf16 %v196, %v196
      %198 = vrot.lane.b32.xlu0 %v161, 64
      %v199 = vpop.permute.xlu0 %198
      %vm200 = vcmask 31744
      %v202 = vsel %vm200, %v197, 0
      %vm204 = vcmask 1041408
      %v206 = vsel %vm204, %v199, 0
      %208 = vmatpush.bf16.msra.mxu0 0
      %209 = vmatpush.bf16.msra.mxu0 0
      %210 = vmatpush.bf16.msra.mxu0 0
      %211 = vmatpush.bf16.msra.mxu0 0
      %212 = vmatpush.bf16.msra.mxu0 0
      %213 = vmatpush.bf16.msra.mxu0 0
      %214 = vmatpush.bf16.msra.mxu0 0
      %215 = vmatpush.bf16.msra.mxu0 %v206
      %216 = vmatmul.bf16.gmra.mxu0 %v202
      %v217 = vpop.f32.mrf.mxu0
      %v218 = vadd.f32 0.0, %v217
      %v219 = vpop.f32.mrf.mxu0
      %220 = vdwg.mxu0
      %221 = vrot.lane.b32.xlu0 %v161, 120
      %v222 = vpop.permute.xlu0 %221
      %223 = vrot.lane.b32.xlu0 %v161, 88
      %v224 = vpop.permute.xlu0 %223
      %v226 = vsel %vm165, %v222, 0
      %v229 = vsel %vm165, %v224, 0
      %231 = vmatpush.bf16.xpose.msra.mxu0 0
      %232 = vmatpush.bf16.xpose.msra.mxu0 0
      %233 = vmatpush.bf16.xpose.msra.mxu0 0
      %234 = vmatpush.bf16.xpose.msra.mxu0 0
      %235 = vmatpush.bf16.xpose.msra.mxu0 0
      %236 = vmatpush.bf16.xpose.msra.mxu0 0
      %237 = vmatpush.bf16.xpose.msra.mxu0 0
      %238 = vmatpush.bf16.xpose.msra.mxu0 %v229
      %239 = vmatmul.bf16.gmra.mxu0 %v226
      %v240 = vpop.f32.mrf.mxu0
      %v241 = vadd.f32 %v159, %v240
      %v242 = vpop.f32.mrf.mxu0
      %243 = vdwg.mxu0
      %v244 = vsel %vm185, %v241, -inf
      %245 = vmax.xlane.f32.xlu0 %v244
      %v246 = vpop.xlane.xlu0 %245
      %v247 = vsub.f32 %v241, %v246
      %v248 = vmul.f32 %v247, 1.442695
      %v249 = vpow.pop %v248
      %v250 = vsel %vm185, %v249, 0.0
      %251 = vadd.xlane.f32.xlu0 %v250
      %v252 = vpop.xlane.xlu0 %251
      %v253 = vrcp.pop %v252
      %v254 = vmul.f32 %v249, %v253
      %v255 = vpack.c.bf16 %v254, %v254
      %256 = vrot.lane.b32.xlu0 %v161, 56
      %v257 = vpop.permute.xlu0 %256
      %v259 = vsel %vm200, %v255, 0
      %v262 = vsel %vm204, %v257, 0
      %264 = vmatpush.bf16.msra.mxu0 0
      %265 = vmatpush.bf16.msra.mxu0 0
      %266 = vmatpush.bf16.msra.mxu0 0
      %267 = vmatpush.bf16.msra.mxu0 0
      %268 = vmatpush.bf16.msra.mxu0 0
      %269 = vmatpush.bf16.msra.mxu0 0
      %270 = vmatpush.bf16.msra.mxu0 0
      %271 = vmatpush.bf16.msra.mxu0 %v262
      %272 = vmatmul.bf16.gmra.mxu0 %v259
      %v273 = vpop.f32.mrf.mxu0
      %v274 = vadd.f32 0.0, %v273
      %v275 = vpop.f32.mrf.mxu0
      %276 = vdwg.mxu0
      %277 = vrot.lane.b32.xlu0 %v161, 112
      %v278 = vpop.permute.xlu0 %277
      %279 = vrot.lane.b32.xlu0 %v161, 80
      %v280 = vpop.permute.xlu0 %279
      %v282 = vsel %vm165, %v278, 0
      %v285 = vsel %vm165, %v280, 0
      %287 = vmatpush.bf16.xpose.msra.mxu0 0
      %288 = vmatpush.bf16.xpose.msra.mxu0 0
      %289 = vmatpush.bf16.xpose.msra.mxu0 0
      %290 = vmatpush.bf16.xpose.msra.mxu0 0
      %291 = vmatpush.bf16.xpose.msra.mxu0 0
      %292 = vmatpush.bf16.xpose.msra.mxu0 0
      %293 = vmatpush.bf16.xpose.msra.mxu0 0
      %294 = vmatpush.bf16.xpose.msra.mxu0 %v285
      %295 = vmatmul.bf16.gmra.mxu0 %v282
      %v296 = vpop.f32.mrf.mxu0
      %v297 = vadd.f32 %v159, %v296
      %v298 = vpop.f32.mrf.mxu0
      %299 = vdwg.mxu0
      %v300 = vsel %vm185, %v297, -inf
      %301 = vmax.xlane.f32.xlu0 %v300
      %v302 = vpop.xlane.xlu0 %301
      %v303 = vsub.f32 %v297, %v302
      %v304 = vmul.f32 %v303, 1.442695
      %v305 = vpow.pop %v304
      %v306 = vsel %vm185, %v305, 0.0
      %307 = vadd.xlane.f32.xlu0 %v306
      %v308 = vpop.xlane.xlu0 %307
      %v309 = vrcp.pop %v308
      %v310 = vmul.f32 %v305, %v309
      %v311 = vpack.c.bf16 %v310, %v310
      %312 = vrot.lane.b32.xlu0 %v161, 48
      %v313 = vpop.permute.xlu0 %312
      %v315 = vsel %vm200, %v311, 0
      %v318 = vsel %vm204, %v313, 0
      %320 = vmatpush.bf16.msra.mxu0 0
      %321 = vmatpush.bf16.msra.mxu0 0
      %322 = vmatpush.bf16.msra.mxu0 0
      %323 = vmatpush.bf16.msra.mxu0 0
      %324 = vmatpush.bf16.msra.mxu0 0
      %325 = vmatpush.bf16.msra.mxu0 0
      %326 = vmatpush.bf16.msra.mxu0 0
      %327 = vmatpush.bf16.msra.mxu0 %v318
      %328 = vmatmul.bf16.gmra.mxu0 %v315
      %v329 = vpop.f32.mrf.mxu0
      %v330 = vadd.f32 0.0, %v329
      %v331 = vpop.f32.mrf.mxu0
      %332 = vdwg.mxu0
      %333 = vrot.lane.b32.xlu0 %v161, 104
      %v334 = vpop.permute.xlu0 %333
      %335 = vrot.lane.b32.xlu0 %v161, 72
      %v336 = vpop.permute.xlu0 %335
      %v338 = vsel %vm165, %v334, 0
      %v341 = vsel %vm165, %v336, 0
      %343 = vmatpush.bf16.xpose.msra.mxu0 0
      %344 = vmatpush.bf16.xpose.msra.mxu0 0
      %345 = vmatpush.bf16.xpose.msra.mxu0 0
      %346 = vmatpush.bf16.xpose.msra.mxu0 0
      %347 = vmatpush.bf16.xpose.msra.mxu0 0
      %348 = vmatpush.bf16.xpose.msra.mxu0 0
      %349 = vmatpush.bf16.xpose.msra.mxu0 0
      %350 = vmatpush.bf16.xpose.msra.mxu0 %v341
      %351 = vmatmul.bf16.gmra.mxu0 %v338
      %v352 = vpop.f32.mrf.mxu0
      %v353 = vadd.f32 %v159, %v352
      %v354 = vpop.f32.mrf.mxu0
      %355 = vdwg.mxu0
      %v356 = vsel %vm185, %v353, -inf
      %357 = vmax.xlane.f32.xlu0 %v356
      %v358 = vpop.xlane.xlu0 %357
      %v359 = vsub.f32 %v353, %v358
      %v360 = vmul.f32 %v359, 1.442695
      %v361 = vpow.pop %v360
      %v362 = vsel %vm185, %v361, 0.0
      %363 = vadd.xlane.f32.xlu0 %v362
      %v364 = vpop.xlane.xlu0 %363
      %v365 = vrcp.pop %v364
      %v366 = vmul.f32 %v361, %v365
      %v367 = vpack.c.bf16 %v366, %v366
      %368 = vrot.lane.b32.xlu0 %v161, 40
      %v369 = vpop.permute.xlu0 %368
      %v371 = vsel %vm200, %v367, 0
      %v374 = vsel %vm204, %v369, 0
      %376 = vmatpush.bf16.msra.mxu0 0
      %377 = vmatpush.bf16.msra.mxu0 0
      %378 = vmatpush.bf16.msra.mxu0 0
      %379 = vmatpush.bf16.msra.mxu0 0
      %380 = vmatpush.bf16.msra.mxu0 0
      %381 = vmatpush.bf16.msra.mxu0 0
      %382 = vmatpush.bf16.msra.mxu0 0
      %383 = vmatpush.bf16.msra.mxu0 %v374
      %384 = vmatmul.bf16.gmra.mxu0 %v371
      %v385 = vpop.f32.mrf.mxu0
      %v386 = vadd.f32 0.0, %v385
      %v387 = vpop.f32.mrf.mxu0
      %388 = vdwg.mxu0
      %390 = vrot.lane.b32.xlu0 %v274, 8
      %v391 = vpop.permute.xlu0 %390
      %394 = vrot.lane.b32.xlu0 %v330, 16
      %v395 = vpop.permute.xlu0 %394
      %398 = vrot.lane.b32.xlu0 %v386, 24
      %v399 = vpop.permute.xlu0 %398
      %v401 = vsel %vm165, %v218, %v391
      %vm402 = vcmask 130048
      %v403 = vsel %vm402, %v401, %v395
      %vm404 = vcmask 195584
      %v405 = vsel %vm404, %v403, %v399
      %vm406 = vcmask 257024
      %407 = vst.msk [vmem:[%s155] sm:$0xf] %vm406, %v405
      %p408 = scmp.lt.s32.totalorder %s13, 1
      %s409 = scalar_select %p408, %s13, 1
      %s410 = smul.addr %s409, 4
      %s411 = scalar_lea.vmem %s2, %s410
      // Predicated region
      $region29: #{decoder_forward.20} parent=27 // pred_check
        %p412 = pneg %p83
      $region30: #{decoder_forward.20} parent=27 // pred_check_branch
        %414 = sbr.rel (%p412) target = $region32
      $region31: #{decoder_forward.20} parent=27 // pred_region
        _
      $region32: #{decoder_forward.20} parent=27 // pred_fallthru
        _
    $region28: #{decoder_forward.20} parent=5 // pred_fallthru
      _
    %p415 = scmp.le.s32.totalorder 2, %s8
    // Predicated region
    $region33: #{decoder_forward.20} parent=5 // pred_check
      %p416 = pneg %p415
    $region34: #{decoder_forward.20} parent=5 // pred_check_branch
      %418 = sbr.rel (%p416) target = $region36
    $region35: #{decoder_forward.20} parent=5 // pred_region
      %s419 = ssub.s32 %s8, 2
      // Predicated region
      $region37: #{decoder_forward.20} parent=35 // pred_check
        %p420 = pneg %p89
      $region38: #{decoder_forward.20} parent=35 // pred_check_branch
        %422 = sbr.rel (%p420) target = $region40
      $region39: #{decoder_forward.20} parent=35 // pred_region
        %p423 = scmp.lt.s32.totalorder %s14, 1
        %s424 = scalar_select %p423, %s14, 1
        %s425 = smul.addr %s424, 4
        %s426 = scalar_lea.vmem %s2, %s425
      $region40: #{decoder_forward.20} parent=35 // pred_fallthru
        _
    $region36: #{decoder_forward.20} parent=5 // pred_fallthru
      _
  $region6: #{decoder_forward.20} parent=0 // loop_footer
    %s12 = sadd.s32 1, %s8
  $region7: #{decoder_forward.20} parent=0 // loop_footer_branch
    %7 = sbr.rel target = $region3
  $region8: #{decoder_forward.20} parent=0 // loop_exit
    _

// kernel: decoder_forward.22
$region0: #{decoder_forward.22}
  #allocation0 [shape = 'u32[]', space=smem, size = 0x4, offset = 0x4, fixed_abs, tag = 'smem constant byte address 0x4 - core index']
  #allocation1 [shape = 'u32[72,128]{1,0:T(1,128)}', space=vmem, size = 0x9000, scoped, tag = 'internal scratch']
  %s0 = inlined_call_operand.vmem [shape: f32[8,32], index: 0, kind: input, shape index: {}]
  %s1 = inlined_call_operand.vmem [shape: bf16[32,32], index: 1, kind: input, shape index: {}]
  %s2 = inlined_call_operand.vmem [shape: f32[8,32], index: 2, kind: output, shape index: {}]
  %s3 = sld [smem:[#allocation0]]
  $region22: #{decoder_forward.22} parent=0
    _
  %s5 = ssub.s32 1, %s3
  %s6 = scalar_select 0, %s5, %s3
  // Predicated region
  $region2: #{decoder_forward.22} parent=0 // pred_check
    _
  $region3: #{decoder_forward.22} parent=0 // pred_check_branch
    %8 = sbr.rel (0) target = $region5
  $region4: #{decoder_forward.22} parent=0 // pred_region
    _
  $region5: #{decoder_forward.22} parent=0 // pred_fallthru
    _
  // Predicated region
  $region6: #{decoder_forward.22} parent=0 // pred_check
    _
  $region7: #{decoder_forward.22} parent=0 // pred_check_branch
    %10 = sbr.rel (0) target = $region9
  $region8: #{decoder_forward.22} parent=0 // pred_region
    _
  $region9: #{decoder_forward.22} parent=0 // pred_fallthru
    _
  %p12 = scmp.eq.s32.totalorder 0, 0
  // Predicated region
  $region10: #{decoder_forward.22} parent=0 // pred_check
    %p13 = pneg %p12
  $region11: #{decoder_forward.22} parent=0 // pred_check_branch
    %15 = sbr.rel (%p13) target = $region13
  $region12: #{decoder_forward.22} parent=0 // pred_region
    %vm16 = vcmask 261120
    %17 = vst.msk [vmem:[%s2] sm:$0xff] %vm16, 0.0
  $region13: #{decoder_forward.22} parent=0 // pred_fallthru
    _
  %v18 = vld [vmem:[%s2] sm:$0xff]
  %v19 = vld [vmem:[%s0] sm:$0xff]
  %v20 = vpack.c.bf16 %v19, %v19
  %v21 = vld [vmem:[%s1] sm:$0xf]
  %v22 = vld [vmem:[%s1 + $0x4] sm:$0xf]
  %v23 = vld [vmem:[%s1 + $0x8] sm:$0xf]
  %v24 = vld [vmem:[%s1 + $0xc] sm:$0xf]
  %v29 = vunpack.c.l.b16 %v21
  %v30 = vunpack.c.l.b16 %v22
  %v31 = vunpack.c.l.b16 %v23
  %v32 = vunpack.c.l.b16 %v24
  %v33 = vpack.c.b16 %v30, %v29
  %v34 = vpack.c.b16 %v32, %v31
  %vm37 = vcmask 261120
  %v39 = vsel %vm37, %v20, 0
  %41 = vmatpush.bf16.msra.mxu0 0
  %42 = vmatpush.bf16.msra.mxu0 0
  %43 = vmatpush.bf16.msra.mxu0 0
  %44 = vmatpush.bf16.msra.mxu0 0
  %45 = vmatpush.bf16.msra.mxu0 0
  %46 = vmatpush.bf16.msra.mxu0 0
  %47 = vmatpush.bf16.msra.mxu0 %v34
  %48 = vmatpush.bf16.msra.mxu0 %v33
  %49 = vmatmul.bf16.gmra.mxu0 %v39
  %v50 = vpop.f32.mrf.mxu0
  %v51 = vadd.f32 0.0, %v50
  %v52 = vpop.f32.mrf.mxu0
  %53 = vdwg.mxu0
  %v54 = vadd.f32 %v18, %v51
  %55 = vst.msk [vmem:[%s2] sm:$0xff] %vm37, %v54
  // Predicated region
  $region14: #{decoder_forward.22} parent=0 // pred_check
    _
  $region15: #{decoder_forward.22} parent=0 // pred_check_branch
    %57 = sbr.rel (0) target = $region17
  $region16: #{decoder_forward.22} parent=0 // pred_region
    _
  $region17: #{decoder_forward.22} parent=0 // pred_fallthru
    _
  // Predicated region
  $region18: #{decoder_forward.22} parent=0 // pred_check
    _
  $region19: #{decoder_forward.22} parent=0 // pred_check_branch
    %59 = sbr.rel (0) target = $region21
  $region20: #{decoder_forward.22} parent=0 // pred_region
    _
  $region21: #{decoder_forward.22} parent=0 // pred_fallthru
    _

// kernel: decoder_forward.19
$region0: #{decoder_forward.19}
  #allocation0 [shape = 'u32[]', space=smem, size = 0x4, offset = 0x4, fixed_abs, tag = 'smem constant byte address 0x4 - core index']
  #allocation1 [shape = 'u32[72,128]{1,0:T(1,128)}', space=vmem, size = 0x9000, scoped, tag = 'internal scratch']
  %s0 = inlined_call_operand.vmem [shape: f32[8,32], index: 0, kind: input, shape index: {}]
  %s1 = inlined_call_operand.vmem [shape: bf16[32,96], index: 1, kind: input, shape index: {}]
  %s2 = inlined_call_operand.vmem [shape: f32[8,96], index: 2, kind: output, shape index: {}]
  %s3 = sld [smem:[#allocation0]]
  $region22: #{decoder_forward.19} parent=0
    _
  %s5 = ssub.s32 1, %s3
  %s6 = scalar_select 0, %s5, %s3
  // Predicated region
  $region2: #{decoder_forward.19} parent=0 // pred_check
    _
  $region3: #{decoder_forward.19} parent=0 // pred_check_branch
    %8 = sbr.rel (0) target = $region5
  $region4: #{decoder_forward.19} parent=0 // pred_region
    _
  $region5: #{decoder_forward.19} parent=0 // pred_fallthru
    _
  // Predicated region
  $region6: #{decoder_forward.19} parent=0 // pred_check
    _
  $region7: #{decoder_forward.19} parent=0 // pred_check_branch
    %10 = sbr.rel (0) target = $region9
  $region8: #{decoder_forward.19} parent=0 // pred_region
    _
  $region9: #{decoder_forward.19} parent=0 // pred_fallthru
    _
  %p12 = scmp.eq.s32.totalorder 0, 0
  // Predicated region
  $region10: #{decoder_forward.19} parent=0 // pred_check
    %p13 = pneg %p12
  $region11: #{decoder_forward.19} parent=0 // pred_check_branch
    %15 = sbr.rel (%p13) target = $region13
  $region12: #{decoder_forward.19} parent=0 // pred_region
    %vm16 = vcmask 785408
    %17 = vst.msk [vmem:[%s2] sm:$0xff] %vm16, 0.0
  $region13: #{decoder_forward.19} parent=0 // pred_fallthru
    _
  %v18 = vld [vmem:[%s2] sm:$0xff]
  %v19 = vld [vmem:[%s0] sm:$0xff]
  %v20 = vpack.c.bf16 %v19, %v19
  %v21 = vld [vmem:[%s1] sm:$0xf]
  %v22 = vld [vmem:[%s1 + $0x4] sm:$0xf]
  %v23 = vld [vmem:[%s1 + $0x8] sm:$0xf]
  %v24 = vld [vmem:[%s1 + $0xc] sm:$0xf]
  %v29 = vunpack.c.l.b16 %v21
  %v30 = vunpack.c.l.b16 %v22
  %v31 = vunpack.c.l.b16 %v23
  %v32 = vunpack.c.l.b16 %v24
  %v33 = vpack.c.b16 %v30, %v29
  %v34 = vpack.c.b16 %v32, %v31
  %vm37 = vcmask 261120
  %v39 = vsel %vm37, %v20, 0
  %41 = vmatpush.bf16.msra.mxu0 0
  %42 = vmatpush.bf16.msra.mxu0 0
  %43 = vmatpush.bf16.msra.mxu0 0
  %44 = vmatpush.bf16.msra.mxu0 0
  %45 = vmatpush.bf16.msra.mxu0 0
  %46 = vmatpush.bf16.msra.mxu0 0
  %47 = vmatpush.bf16.msra.mxu0 %v34
  %48 = vmatpush.bf16.msra.mxu0 %v33
  %49 = vmatmul.bf16.gmra.mxu0 %v39
  %v50 = vpop.f32.mrf.mxu0
  %v51 = vadd.f32 0.0, %v50
  %v52 = vpop.f32.mrf.mxu0
  %53 = vdwg.mxu0
  %v54 = vadd.f32 %v18, %v51
  %vm55 = vcmask 785408
  %56 = vst.msk [vmem:[%s2] sm:$0xff] %vm55, %v54
  // Predicated region
  $region14: #{decoder_forward.19} parent=0 // pred_check
    _
  $region15: #{decoder_forward.19} parent=0 // pred_check_branch
    %58 = sbr.rel (0) target = $region17
  $region16: #{decoder_forward.19} parent=0 // pred_region
    _
  $region17: #{decoder_forward.19} parent=0 // pred_fallthru
    _
  // Predicated region
  $region18: #{decoder_forward.19} parent=0 // pred_check
    _
  $region19: #{decoder_forward.19} parent=0 // pred_check_branch
    %60 = sbr.rel (0) target = $region21
  $region20: #{decoder_forward.19} parent=0 // pred_region
    _
  $region21: #{decoder_forward.19} parent=0 // pred_fallthru
    _

// kernel: decoder_forward.21
$region0: #{decoder_forward.21}
  #allocation0 [shape = 'u32[]', space=smem, size = 0x4, offset = 0x4, fixed_abs, tag = 'smem constant byte address 0x4 - core index']
  #allocation1 [shape = 'u32[72,128]{1,0:T(1,128)}', space=vmem, size = 0x9000, scoped, tag = 'internal scratch']
  %s0 = inlined_call_operand.vmem [shape: f32[8,32], index: 0, kind: input, shape index: {}]
  %s1 = inlined_call_operand.vmem [shape: bf16[32,32], index: 1, kind: input, shape index: {}]
  %s2 = inlined_call_operand.vmem [shape: f32[8,32], index: 2, kind: input, shape index: {}]
  %s3 = inlined_call_operand.vmem [shape: f32[1,32], index: 3, kind: input, shape index: {}]
  %s4 = inlined_call_operand.vmem [shape: f32[1,32], index: 4, kind: input, shape index: {}]
  %s5 = inlined_call_operand.vmem [shape: f32[8,32], index: 5, kind: output, shape index: {}]
  %s6 = sld [smem:[#allocation0]]
  $region38: #{decoder_forward.21} parent=0
    _
  %s8 = ssub.s32 1, %s6
  %s9 = scalar_select 0, %s8, %s6
  // Predicated region
  $region2: #{decoder_forward.21} parent=0 // pred_check
    _
  $region3: #{decoder_forward.21} parent=0 // pred_check_branch
    %11 = sbr.rel (0) target = $region5
  $region4: #{decoder_forward.21} parent=0 // pred_region
    _
  $region5: #{decoder_forward.21} parent=0 // pred_fallthru
    _
  // Predicated region
  $region6: #{decoder_forward.21} parent=0 // pred_check
    _
  $region7: #{decoder_forward.21} parent=0 // pred_check_branch
    %13 = sbr.rel (0) target = $region9
  $region8: #{decoder_forward.21} parent=0 // pred_region
    _
  $region9: #{decoder_forward.21} parent=0 // pred_fallthru
    _
  // Predicated region
  $region10: #{decoder_forward.21} parent=0 // pred_check
    _
  $region11: #{decoder_forward.21} parent=0 // pred_check_branch
    %15 = sbr.rel (0) target = $region13
  $region12: #{decoder_forward.21} parent=0 // pred_region
    _
  $region13: #{decoder_forward.21} parent=0 // pred_fallthru
    _
  // Predicated region
  $region14: #{decoder_forward.21} parent=0 // pred_check
    _
  $region15: #{decoder_forward.21} parent=0 // pred_check_branch
    %17 = sbr.rel (0) target = $region17
  $region16: #{decoder_forward.21} parent=0 // pred_region
    _
  $region17: #{decoder_forward.21} parent=0 // pred_fallthru
    _
  // Predicated region
  $region18: #{decoder_forward.21} parent=0 // pred_check
    _
  $region19: #{decoder_forward.21} parent=0 // pred_check_branch
    %19 = sbr.rel (0) target = $region21
  $region20: #{decoder_forward.21} parent=0 // pred_region
    _
  $region21: #{decoder_forward.21} parent=0 // pred_fallthru
    _
  %p21 = scmp.eq.s32.totalorder 0, 0
  // Predicated region
  $region22: #{decoder_forward.21} parent=0 // pred_check
    %p22 = pneg %p21
  $region23: #{decoder_forward.21} parent=0 // pred_check_branch
    %24 = sbr.rel (%p22) target = $region25
  $region24: #{decoder_forward.21} parent=0 // pred_region
    %vm25 = vcmask 261120
    %26 = vst.msk [vmem:[%s5] sm:$0xff] %vm25, 0.0
  $region25: #{decoder_forward.21} parent=0 // pred_fallthru
    _
  %v27 = vld [vmem:[%s5] sm:$0xff]
  %v28 = vld [vmem:[%s0] sm:$0xff]
  %v29 = vpack.c.bf16 %v28, %v28
  %v30 = vld [vmem:[%s1] sm:$0xf]
  %v31 = vld [vmem:[%s1 + $0x4] sm:$0xf]
  %v32 = vld [vmem:[%s1 + $0x8] sm:$0xf]
  %v33 = vld [vmem:[%s1 + $0xc] sm:$0xf]
  %v38 = vunpack.c.l.b16 %v30
  %v39 = vunpack.c.l.b16 %v31
  %v40 = vunpack.c.l.b16 %v32
  %v41 = vunpack.c.l.b16 %v33
  %v42 = vpack.c.b16 %v39, %v38
  %v43 = vpack.c.b16 %v41, %v40
  %vm46 = vcmask 261120
  %v48 = vsel %vm46, %v29, 0
  %50 = vmatpush.bf16.msra.mxu0 0
  %51 = vmatpush.bf16.msra.mxu0 0
  %52 = vmatpush.bf16.msra.mxu0 0
  %53 = vmatpush.bf16.msra.mxu0 0
  %54 = vmatpush.bf16.msra.mxu0 0
  %55 = vmatpush.bf16.msra.mxu0 0
  %56 = vmatpush.bf16.msra.mxu0 %v43
  %57 = vmatpush.bf16.msra.mxu0 %v42
  %58 = vmatmul.bf16.gmra.mxu0 %v48
  %v59 = vpop.f32.mrf.mxu0
  %v60 = vadd.f32 0.0, %v59
  %v61 = vpop.f32.mrf.mxu0
  %62 = vdwg.mxu0
  %v63 = vadd.f32 %v27, %v60
  %64 = vst.msk [vmem:[%s5] sm:$0xff] %vm46, %v63
  // Predicated region
  $region26: #{decoder_forward.21} parent=0 // pred_check
    %p65 = pneg %p21
  $region27: #{decoder_forward.21} parent=0 // pred_check_branch
    %67 = sbr.rel (%p65) target = $region29
  $region28: #{decoder_forward.21} parent=0 // pred_region
    %v68 = vld [vmem:[%s5] sm:$0xff]
    %v69 = vld [vmem:[%s2] sm:$0xff]
    %v70 = vadd.f32 %v68, %v69
    %v71 = vsel %vm46, %v70, 0.0
    %72 = vadd.xlane.f32.xlu0 %v71
    %v73 = vpop.xlane.xlu0 %72
    %v74 = vrcp.pop 32.0
    %v75 = vmul.f32 32.0, %v74
    %v76 = vsub.f32 1.0, %v75
    %v77 = vmul.f32 %v74, %v76
    %v78 = vadd.f32 %v74, %v77
    %vm79 = vweird.f32 %v74
    %v80 = vsel %vm79, %v74, %v78
    %v81 = vmul.f32 %v73, %v80
    %v82 = vsub.f32 %v70, %v81
    %v83 = vmul.f32 %v82, %v82
    %v84 = vsel %vm46, %v83, 0.0
    %85 = vadd.xlane.f32.xlu0 %v84
    %v86 = vpop.xlane.xlu0 %85
    %v87 = vmul.f32 %v86, %v80
    %v88 = vadd.f32 %v87, 1e-05
    %v89 = vrsqrt.pop %v88
    %v90 = vmul.f32 %v89, %v88
    %v91 = vmul.f32 %v90, %v89
    %v92 = vmul.f32 0.5, %v91
    %v93 = vsub.f32 1.5, %v92
    %v94 = vmul.f32 %v89, %v93
    %vm95 = vweird.f32 %v88
    %vm96 = vweird.f32 %v89
    %vm97 = vmor %vm95, %vm96
    %v98 = vsel %vm97, %v89, %v94
    %v99 = vmul.f32 %v82, %v98
    %v100 = vld [vmem:[%s3] sm:$0x1]
    %v102 = vperm.slane %v100, 0
    %v104 = vmul.f32 %v99, %v102
    %v105 = vld [vmem:[%s4] sm:$0x1]
    %v107 = vperm.slane %v105, 0
    %v109 = vadd.f32 %v104, %v107
    %110 = vst.msk [vmem:[%s5] sm:$0xff] %vm46, %v109
  $region29: #{decoder_forward.21} parent=0 // pred_fallthru
    _
  // Predicated region
  $region30: #{decoder_forward.21} parent=0 // pred_check
    _
  $region31: #{decoder_forward.21} parent=0 // pred_check_branch
    %112 = sbr.rel (0) target = $region33
  $region32: #{decoder_forward.21} parent=0 // pred_region
    _
  $region33: #{decoder_forward.21} parent=0 // pred_fallthru
    _
  // Predicated region
  $region34: #{decoder_forward.21} parent=0 // pred_check
    _
  $region35: #{decoder_forward.21} parent=0 // pred_check_branch
    %114 = sbr.rel (0) target = $region37
  $region36: #{decoder_forward.21} parent=0 // pred_region
    _
  $region37: #{decoder_forward.21} parent=0 // pred_fallthru
    _

// kernel: decoder_forward.26
$region0: #{decoder_forward.26}
  #allocation0 [shape = 'u32[]', space=smem, size = 0x4, offset = 0x4, fixed_abs, tag = 'smem constant byte address 0x4 - core index']
  #allocation1 [shape = 'u32[72,128]{1,0:T(1,128)}', space=vmem, size = 0x9000, scoped, tag = 'internal scratch']
  %s0 = inlined_call_operand.vmem [shape: f32[8,32], index: 0, kind: input, shape index: {}]
  %s1 = inlined_call_operand.vmem [shape: bf16[32,64], index: 1, kind: input, shape index: {}]
  %s2 = inlined_call_operand.vmem [shape: f32[1,64], index: 2, kind: input, shape index: {}]
  %s3 = inlined_call_operand.vmem [shape: f32[8,64], index: 3, kind: output, shape index: {}]
  %s4 = sld [smem:[#allocation0]]
  $region30: #{decoder_forward.26} parent=0
    _
  %s6 = ssub.s32 1, %s4
  %s7 = scalar_select 0, %s6, %s4
  // Predicated region
  $region2: #{decoder_forward.26} parent=0 // pred_check
    _
  $region3: #{decoder_forward.26} parent=0 // pred_check_branch
    %9 = sbr.rel (0) target = $region5
  $region4: #{decoder_forward.26} parent=0 // pred_region
    _
  $region5: #{decoder_forward.26} parent=0 // pred_fallthru
    _
  // Predicated region
  $region6: #{decoder_forward.26} parent=0 // pred_check
    _
  $region7: #{decoder_forward.26} parent=0 // pred_check_branch
    %11 = sbr.rel (0) target = $region9
  $region8: #{decoder_forward.26} parent=0 // pred_region
    _
  $region9: #{decoder_forward.26} parent=0 // pred_fallthru
    _
  // Predicated region
  $region10: #{decoder_forward.26} parent=0 // pred_check
    _
  $region11: #{decoder_forward.26} parent=0 // pred_check_branch
    %13 = sbr.rel (0) target = $region13
  $region12: #{decoder_forward.26} parent=0 // pred_region
    _
  $region13: #{decoder_forward.26} parent=0 // pred_fallthru
    _
  %p15 = scmp.eq.s32.totalorder 0, 0
  // Predicated region
  $region14: #{decoder_forward.26} parent=0 // pred_check
    %p16 = pneg %p15
  $region15: #{decoder_forward.26} parent=0 // pred_check_branch
    %18 = sbr.rel (%p16) target = $region17
  $region16: #{decoder_forward.26} parent=0 // pred_region
    %vm19 = vcmask 523264
    %20 = vst.msk [vmem:[%s3] sm:$0xff] %vm19, 0.0
  $region17: #{decoder_forward.26} parent=0 // pred_fallthru
    _
  %v21 = vld [vmem:[%s3] sm:$0xff]
  %v22 = vld [vmem:[%s0] sm:$0xff]
  %v23 = vpack.c.bf16 %v22, %v22
  %v24 = vld [vmem:[%s1] sm:$0xf]
  %v25 = vld [vmem:[%s1 + $0x4] sm:$0xf]
  %v26 = vld [vmem:[%s1 + $0x8] sm:$0xf]
  %v27 = vld [vmem:[%s1 + $0xc] sm:$0xf]
  %v32 = vunpack.c.l.b16 %v24
  %v33 = vunpack.c.l.b16 %v25
  %v34 = vunpack.c.l.b16 %v26
  %v35 = vunpack.c.l.b16 %v27
  %v36 = vpack.c.b16 %v33, %v32
  %v37 = vpack.c.b16 %v35, %v34
  %vm40 = vcmask 261120
  %v42 = vsel %vm40, %v23, 0
  %44 = vmatpush.bf16.msra.mxu0 0
  %45 = vmatpush.bf16.msra.mxu0 0
  %46 = vmatpush.bf16.msra.mxu0 0
  %47 = vmatpush.bf16.msra.mxu0 0
  %48 = vmatpush.bf16.msra.mxu0 0
  %49 = vmatpush.bf16.msra.mxu0 0
  %50 = vmatpush.bf16.msra.mxu0 %v37
  %51 = vmatpush.bf16.msra.mxu0 %v36
  %52 = vmatmul.bf16.gmra.mxu0 %v42
  %v53 = vpop.f32.mrf.mxu0
  %v54 = vadd.f32 0.0, %v53
  %v55 = vpop.f32.mrf.mxu0
  %56 = vdwg.mxu0
  %v57 = vadd.f32 %v21, %v54
  %vm58 = vcmask 523264
  %59 = vst.msk [vmem:[%s3] sm:$0xff] %vm58, %v57
  // Predicated region
  $region18: #{decoder_forward.26} parent=0 // pred_check
    %p60 = pneg %p15
  $region19: #{decoder_forward.26} parent=0 // pred_check_branch
    %62 = sbr.rel (%p60) target = $region21
  $region20: #{decoder_forward.26} parent=0 // pred_region
    %v63 = vld [vmem:[%s3] sm:$0xff]
    %v64 = vld [vmem:[%s2] sm:$0x1]
    %v66 = vperm.slane %v64, 0
    %v68 = vadd.f32 %v63, %v66
    %v69 = vmax.f32 %v68, 0.0
    %70 = vst.msk [vmem:[%s3] sm:$0xff] %vm58, %v69
  $region21: #{decoder_forward.26} parent=0 // pred_fallthru
    _
  // Predicated region
  $region22: #{decoder_forward.26} parent=0 // pred_check
    _
  $region23: #{decoder_forward.26} parent=0 // pred_check_branch
    %72 = sbr.rel (0) target = $region25
  $region24: #{decoder_forward.26} parent=0 // pred_region
    _
  $region25: #{decoder_forward.26} parent=0 // pred_fallthru
    _
  // Predicated region
  $region26: #{decoder_forward.26} parent=0 // pred_check
    _
  $region27: #{decoder_forward.26} parent=0 // pred_check_branch
    %74 = sbr.rel (0) target = $region29
  $region28: #{decoder_forward.26} parent=0 // pred_region
    _
  $region29: #{decoder_forward.26} parent=0 // pred_fallthru
    _

// kernel: decoder_forward.23
$region0: #{decoder_forward.23}
  #allocation0 [shape = 'u32[]', space=smem, size = 0x4, offset = 0x4, fixed_abs, tag = 'smem constant byte address 0x4 - core index']
  #allocation1 [shape = 'u32[72,128]{1,0:T(1,128)}', space=vmem, size = 0x9000, scoped, tag = 'internal scratch']
  %s0 = inlined_call_operand.vmem [shape: f32[16,32], index: 0, kind: input, shape index: {}]
  %s1 = inlined_call_operand.vmem [shape: bf16[32,64], index: 1, kind: input, shape index: {}]
  %s2 = inlined_call_operand.vmem [shape: f32[16,64], index: 2, kind: output, shape index: {}]
  %s3 = sld [smem:[#allocation0]]
  $region22: #{decoder_forward.23} parent=0
    _
  %s5 = ssub.s32 1, %s3
  %s6 = scalar_select 0, %s5, %s3
  // Predicated region
  $region2: #{decoder_forward.23} parent=0 // pred_check
    _
  $region3: #{decoder_forward.23} parent=0 // pred_check_branch
    %8 = sbr.rel (0) target = $region5
  $region4: #{decoder_forward.23} parent=0 // pred_region
    _
  $region5: #{decoder_forward.23} parent=0 // pred_fallthru
    _
  // Predicated region
  $region6: #{decoder_forward.23} parent=0 // pred_check
    _
  $region7: #{decoder_forward.23} parent=0 // pred_check_branch
    %10 = sbr.rel (0) target = $region9
  $region8: #{decoder_forward.23} parent=0 // pred_region
    _
  $region9: #{decoder_forward.23} parent=0 // pred_fallthru
    _
  %p12 = scmp.eq.s32.totalorder 0, 0
  // Predicated region
  $region10: #{decoder_forward.23} parent=0 // pred_check
    %p13 = pneg %p12
  $region11: #{decoder_forward.23} parent=0 // pred_check_branch
    %15 = sbr.rel (%p13) target = $region13
  $region12: #{decoder_forward.23} parent=0 // pred_region
    %vm16 = vcmask 523264
    %17 = vst.msk [vmem:[%s2] sm:$0xff] %vm16, 0.0
    %18 = vst.msk [vmem:[%s2 + $0x8] sm:$0xff] %vm16, 0.0
  $region13: #{decoder_forward.23} parent=0 // pred_fallthru
    _
  %v19 = vld [vmem:[%s2] sm:$0xff]
  %v20 = vld [vmem:[%s2 + $0x8] sm:$0xff]
  %v21 = vld [vmem:[%s0] sm:$0xff]
  %v22 = vld [vmem:[%s0 + $0x8] sm:$0xff]
  %v23 = vpack.c.bf16 %v22, %v21
  %v24 = vld [vmem:[%s1] sm:$0xf]
  %v25 = vld [vmem:[%s1 + $0x4] sm:$0xf]
  %v26 = vld [vmem:[%s1 + $0x8] sm:$0xf]
  %v27 = vld [vmem:[%s1 + $0xc] sm:$0xf]
  %v32 = vunpack.c.l.b16 %v24
  %v33 = vunpack.c.l.b16 %v25
  %v34 = vunpack.c.l.b16 %v26
  %v35 = vunpack.c.l.b16 %v27
  %v36 = vpack.c.b16 %v33, %v32
  %v37 = vpack.c.b16 %v35, %v34
  %vm40 = vcmask 261120
  %v42 = vsel %vm40, %v23, 0
  %44 = vmatpush.bf16.msra.mxu0 0
  %45 = vmatpush.bf16.msra.mxu0 0
  %46 = vmatpush.bf16.msra.mxu0 0
  %47 = vmatpush.bf16.msra.mxu0 0
  %48 = vmatpush.bf16.msra.mxu0 0
  %49 = vmatpush.bf16.msra.mxu0 0
  %50 = vmatpush.bf16.msra.mxu0 %v37
  %51 = vmatpush.bf16.msra.mxu0 %v36
  %52 = vmatmul.bf16.gmra.mxu0 %v42
  %v53 = vpop.f32.mrf.mxu0
  %v54 = vadd.f32 0.0, %v53
  %v55 = vpop.f32.mrf.mxu0
  %v56 = vadd.f32 0.0, %v55
  %57 = vdwg.mxu0
  %v58 = vadd.f32 %v19, %v54
  %v59 = vadd.f32 %v20, %v56
  %vm60 = vcmask 523264
  %61 = vst.msk [vmem:[%s2] sm:$0xff] %vm60, %v58
  %62 = vst.msk [vmem:[%s2 + $0x8] sm:$0xff] %vm60, %v59
  // Predicated region
  $region14: #{decoder_forward.23} parent=0 // pred_check
    _
  $region15: #{decoder_forward.23} parent=0 // pred_check_branch
    %64 = sbr.rel (0) target = $region17
  $region16: #{decoder_forward.23} parent=0 // pred_region
    _
  $region17: #{decoder_forward.23} parent=0 // pred_fallthru
    _
  // Predicated region
  $region18: #{decoder_forward.23} parent=0 // pred_check
    _
  $region19: #{decoder_forward.23} parent=0 // pred_check_branch
    %66 = sbr.rel (0) target = $region21
  $region20: #{decoder_forward.23} parent=0 // pred_region
    _
  $region21: #{decoder_forward.23} parent=0 // pred_fallthru
    _

// kernel: decoder_forward.24
$region0: #{decoder_forward.24}
  #allocation0 [shape = 'u32[]', space=smem, size = 0x4, offset = 0x4, fixed_abs, tag = 'smem constant byte address 0x4 - core index']
  #allocation1 [shape = 'u32[72,128]{1,0:T(1,128)}', space=vmem, size = 0x9000, scoped, tag = 'internal scratch']
  %s0 = inlined_call_operand.vmem [shape: f32[2,4,32], index: 0, kind: input, shape index: {}]
  %s1 = inlined_call_operand.vmem [shape: f32[2,8,64], index: 1, kind: input, shape index: {}]
  %s2 = inlined_call_operand.vmem [shape: f32[2,1,1,8], index: 2, kind: input, shape index: {}]
  %s3 = inlined_call_operand.vmem [shape: f32[2,4,32], index: 3, kind: output, shape index: {}]
  %s4 = sld [smem:[#allocation0]]
  $region45: #{decoder_forward.24} parent=0
    _
  %s6 = ssub.s32 1, %s4
  %s7 = scalar_select 0, %s6, %s4
  loop: start=0, step=1, limit=4
  $region2: #{decoder_forward.24} parent=0 // loop_pre_header
    _
  $region3: #{decoder_forward.24} parent=0 // loop_header
    %s9 = sphi 0, %s13
    %p10 = scmp.ge.s32.totalorder %s9, 4
    %s19 = sphi 0, %s21
    %s22 = sphi 0, %s19
    %s23 = sphi 0, %s22
    %s39 = sphi 0, %s23
    %s45 = sphi 0, %s47
    %s48 = sphi 0, %s45
    %s49 = sphi 0, %s48
    %s65 = sphi 0, %s49
    %s71 = sphi 0, %s73
    %s74 = sphi 0, %s71
    %s75 = sphi 0, %s74
    %s91 = sphi 0, %s75
    %s97 = sphi 0, %s99
    %s100 = sphi 0, %s97
    %s101 = sphi 0, %s100
    %s117 = sphi 0, %s101
  $region4: #{decoder_forward.24} parent=0 // loop_header_branch
    %12 = sbr.rel (%p10) target = $region8
  $region5: #{decoder_forward.24} parent=0 // loop_body
    %s14 = ssub.s32 %s9, 1
    %s15 = ssub.s32 %s9, 2
    %s16 = sadd.s32 %s9, 1
    %s17 = ssub.s32 %s9, %s16
    %p18 = scmp.eq.s32.totalorder %s17, 0
    %s20 = sadd.s32 %s19, 1
    %s21 = scalar_select %p18, %s19, %s20
    %p24 = pneg %p18
    %p25 = scmp.eq.s32.totalorder %s9, 1
    %p26 = por %p24, %p25
    %p27 = scmp.ne.s32.totalorder %s19, %s22
    %p28 = scmp.eq.s32.totalorder %s9, 0
    %p29 = por %p27, %p28
    %p30 = scmp.ne.s32.totalorder %s19, %s22
    %p31 = scmp.eq.s32.totalorder %s14, 1
    %p32 = por %p30, %p31
    %p33 = scmp.ne.s32.totalorder %s22, %s23
    %p34 = scmp.eq.s32.totalorder %s14, 0
    %p35 = por %p33, %p34
    %p36 = scmp.ne.s32.totalorder %s22, %s23
    %p37 = scmp.eq.s32.totalorder %s15, 1
    %p38 = por %p36, %p37
    %p40 = scmp.ne.s32.totalorder %s23, %s39
    %p41 = scmp.eq.s32.totalorder %s15, 0
    %p42 = por %p40, %p41
    %s43 = ssub.s32 %s9, %s16
    %p44 = scmp.eq.s32.totalorder %s43, 0
    %s46 = sadd.s32 %s45, 1
    %s47 = scalar_select %p44, %s45, %s46
    %p50 = pneg %p44
    %p51 = scmp.eq.s32.totalorder %s9, 1
    %p52 = por %p50, %p51
    %p53 = scmp.ne.s32.totalorder %s45, %s48
    %p54 = scmp.eq.s32.totalorder %s9, 0
    %p55 = por %p53, %p54
    %p56 = scmp.ne.s32.totalorder %s45, %s48
    %p57 = scmp.eq.s32.totalorder %s14, 1
    %p58 = por %p56, %p57
    %p59 = scmp.ne.s32.totalorder %s48, %s49
    %p60 = scmp.eq.s32.totalorder %s14, 0
    %p61 = por %p59, %p60
    %p62 = scmp.ne.s32.totalorder %s48, %s49
    %p63 = scmp.eq.s32.totalorder %s15, 1
    %p64 = por %p62, %p63
    %p66 = scmp.ne.s32.totalorder %s49, %s65
    %p67 = scmp.eq.s32.totalorder %s15, 0
    %p68 = por %p66, %p67
    %s69 = ssub.s32 %s9, %s16
    %p70 = scmp.eq.s32.totalorder %s69, 0
    %s72 = sadd.s32 %s71, 1
    %s73 = scalar_select %p70, %s71, %s72
    %p76 = pneg %p70
    %p77 = scmp.eq.s32.totalorder %s9, 1
    %p78 = por %p76, %p77
    %p79 = scmp.ne.s32.totalorder %s71, %s74
    %p80 = scmp.eq.s32.totalorder %s9, 0
    %p81 = por %p79, %p80
    %p82 = scmp.ne.s32.totalorder %s71, %s74
    %p83 = scmp.eq.s32.totalorder %s14, 1
    %p84 = por %p82, %p83
    %p85 = scmp.ne.s32.totalorder %s74, %s75
    %p86 = scmp.eq.s32.totalorder %s14, 0
    %p87 = por %p85, %p86
    %p88 = scmp.ne.s32.totalorder %s74, %s75
    %p89 = scmp.eq.s32.totalorder %s15, 1
    %p90 = por %p88, %p89
    %p92 = scmp.ne.s32.totalorder %s75, %s91
    %p93 = scmp.eq.s32.totalorder %s15, 0
    %p94 = por %p92, %p93
    %s95 = ssub.s32 %s9, %s16
    %p96 = scmp.eq.s32.totalorder %s95, 0
    %s98 = sadd.s32 %s97, 1
    %s99 = scalar_select %p96, %s97, %s98
    %p102 = pneg %p96
    %p103 = scmp.eq.s32.totalorder %s9, 1
    %p104 = por %p102, %p103
    %p105 = scmp.ne.s32.totalorder %s97, %s100
    %p106 = scmp.eq.s32.totalorder %s9, 0
    %p107 = por %p105, %p106
    %p108 = scmp.ne.s32.totalorder %s97, %s100
    %p109 = scmp.eq.s32.totalorder %s14, 1
    %p110 = por %p108, %p109
    %p111 = scmp.ne.s32.totalorder %s100, %s101
    %p112 = scmp.eq.s32.totalorder %s14, 0
    %p113 = por %p111, %p112
    %p114 = scmp.ne.s32.totalorder %s100, %s101
    %p115 = scmp.eq.s32.totalorder %s15, 1
    %p116 = por %p114, %p115
    %p118 = scmp.ne.s32.totalorder %s101, %s117
    %p119 = scmp.eq.s32.totalorder %s15, 0
    %p120 = por %p118, %p119
    %p121 = scmp.le.s32.totalorder 1, %s9
    %p122 = scmp.lt.s32.totalorder %s9, 3
    %p123 = pnand %p121, %p122
    %p124 = pneg %p123
    // Predicated region
    $region9: #{decoder_forward.24} parent=5 // pred_check
      _
    $region10: #{decoder_forward.24} parent=5 // pred_check_branch
      %126 = sbr.rel (%p123) target = $region12
    $region11: #{decoder_forward.24} parent=5 // pred_region
      %s127 = ssub.s32 %s9, 1
    $region12: #{decoder_forward.24} parent=5 // pred_fallthru
      _
    %p128 = scmp.lt.s32.totalorder %s9, 2
    // Predicated region
    $region13: #{decoder_forward.24} parent=5 // pred_check
      %p129 = pneg %p128
    $region14: #{decoder_forward.24} parent=5 // pred_check_branch
      %131 = sbr.rel (%p129) target = $region16
    $region15: #{decoder_forward.24} parent=5 // pred_region
      // Predicated region
      $region17: #{decoder_forward.24} parent=15 // pred_check
        %p132 = pneg %p29
      $region18: #{decoder_forward.24} parent=15 // pred_check_branch
        %134 = sbr.rel (%p132) target = $region20
      $region19: #{decoder_forward.24} parent=15 // pred_region
        %p135 = scmp.lt.s32.totalorder %s9, 1
        %s136 = scalar_select %p135, %s9, 1
        %s137 = smul.addr %s136, 4
        %s138 = scalar_lea.vmem %s0, %s137
      $region20: #{decoder_forward.24} parent=15 // pred_fallthru
        _
      // Predicated region
      $region21: #{decoder_forward.24} parent=15 // pred_check
        %p139 = pneg %p55
      $region22: #{decoder_forward.24} parent=15 // pred_check_branch
        %141 = sbr.rel (%p139) target = $region24
      $region23: #{decoder_forward.24} parent=15 // pred_region
        %p142 = scmp.lt.s32.totalorder %s9, 1
        %s143 = scalar_select %p142, %s9, 1
        %s144 = smul.addr %s143, 8
        %s145 = scalar_lea.vmem %s1, %s144
      $region24: #{decoder_forward.24} parent=15 // pred_fallthru
        _
      // Predicated region
      $region25: #{decoder_forward.24} parent=15 // pred_check
        %p146 = pneg %p81
      $region26: #{decoder_forward.24} parent=15 // pred_check_branch
        %148 = sbr.rel (%p146) target = $region28
      $region27: #{decoder_forward.24} parent=15 // pred_region
        %p149 = scmp.lt.s32.totalorder %s9, 1
        %s150 = scalar_select %p149, %s9, 1
        %s151 = scalar_lea.vmem %s2, %s150
      $region28: #{decoder_forward.24} parent=15 // pred_fallthru
        _
    $region16: #{decoder_forward.24} parent=5 // pred_fallthru
      _
    %p152 = scmp.le.s32.totalorder 1, %s9
    %p153 = scmp.lt.s32.totalorder %s9, 3
    %p154 = pnand %p152, %p153
    %p155 = pneg %p154
    // Predicated region
    $region29: #{decoder_forward.24} parent=5 // pred_check
      _
    $region30: #{decoder_forward.24} parent=5 // pred_check_branch
      %157 = sbr.rel (%p154) target = $region32
    $region31: #{decoder_forward.24} parent=5 // pred_region
      %s158 = ssub.s32 %s9, 1
      %p159 = scmp.lt.s32.totalorder %s14, 1
      %s160 = scalar_select %p159, %s14, 1
      %s161 = smul.addr %s160, 4
      %s162 = scalar_lea.vmem %s0, %s161
      %p163 = pneg %p35
      %p164 = pneg %p32
      %p165 = scmp.lt.s32.totalorder %s14, 1
      %s166 = scalar_select %p165, %s14, 1
      %s167 = smul.addr %s166, 8
      %s168 = scalar_lea.vmem %s1, %s167
      %p169 = pneg %p61
      %p170 = pneg %p58
      %p171 = scmp.lt.s32.totalorder %s14, 1
      %s172 = scalar_select %p171, %s14, 1
      %s173 = scalar_lea.vmem %s2, %s172
      %p174 = pneg %p87
      %p175 = pneg %p84
      %p176 = pneg %p113
      %p177 = pneg %p110
      %p178 = scmp.lt.s32.totalorder %s14, 1
      %s179 = scalar_select %p178, %s14, 1
      %s180 = smul.addr %s179, 4
      %s181 = scalar_lea.vmem %s3, %s180
      %p182 = scmp.lt.s32.totalorder %s14, 1
      %s183 = scalar_select %p182, %s14, 1
      %s184 = smul.addr %s183, 4
      %s185 = scalar_lea.vmem %s0, %s184
      %p186 = scmp.lt.s32.totalorder %s14, 1
      %s187 = scalar_select %p186, %s14, 1
      %s188 = smul.addr %s187, 8
      %s189 = scalar_lea.vmem %s1, %s188
      %p190 = scmp.lt.s32.totalorder %s14, 1
      %s191 = scalar_select %p190, %s14, 1
      %s192 = scalar_lea.vmem %s2, %s191
      %p193 = scmp.lt.s32.totalorder %s14, 1
      %s194 = scalar_select %p193, %s14, 1
      %s195 = smul.addr %s194, 4
      %s196 = scalar_lea.vmem %s3, %s195
      %v198 = vld [vmem:[%s192] sm:$0x1]
      %vm199 = vcmp.eq.f32.partialorder %v198, 0.0
      %v200 = vsel %vm199, -1e+30, 0.0
      %v201 = vld [vmem:[%s185] sm:$0xf]
      %v202 = vld [vmem:[%s189] sm:$0xff]
      %v203 = vpack.c.bf16 %v201, %v201
      %v204 = vpack.c.bf16 %v202, %v202
      %v206 = vperm.slane %v200, 0
      %vm208 = vcmask 64512
      %v210 = vsel %vm208, %v203, 0
      %v213 = vsel %vm208, %v204, 0
      %215 = vmatpush.bf16.xpose.msra.mxu0 0
      %216 = vmatpush.bf16.xpose.msra.mxu0 0
      %217 = vmatpush.bf16.xpose.msra.mxu0 0
      %218 = vmatpush.bf16.xpose.msra.mxu0 0
      %219 = vmatpush.bf16.xpose.msra.mxu0 0
      %220 = vmatpush.bf16.xpose.msra.mxu0 0
      %221 = vmatpush.bf16.xpose.msra.mxu0 0
      %222 = vmatpush.bf16.xpose.msra.mxu0 %v213
      %223 = vmatmul.bf16.gmra.mxu0 %v210
      %v224 = vpop.f32.mrf.mxu0
      %v225 = vadd.f32 %v206, %v224
      %v226 = vpop.f32.mrf.mxu0
      %227 = vdwg.mxu0
      %vm228 = vcmask 60416
      %v229 = vsel %vm228, %v225, -inf
      %230 = vmax.xlane.f32.xlu0 %v229
      %v231 = vpop.xlane.xlu0 %230
      %v232 = vsub.f32 %v225, %v231
      %v233 = vmul.f32 %v232, 1.442695
      %v234 = vpow.pop %v233
      %v235 = vsel %vm228, %v234, 0.0
      %236 = vadd.xlane.f32.xlu0 %v235
      %v237 = vpop.xlane.xlu0 %236
      %v238 = vrcp.pop %v237
      %v239 = vmul.f32 %v234, %v238
      %v240 = vpack.c.bf16 %v239, %v239
      %242 = vrot.lane.b32.xlu0 %v204, 96
      %v243 = vpop.permute.xlu0 %242
      %v245 = vsel %vm208, %v240, 0
      %vm247 = vcmask 1043456
      %v249 = vsel %vm247, %v243, 0
      %251 = vmatpush.bf16.msra.mxu0 0
      %252 = vmatpush.bf16.msra.mxu0 0
      %253 = vmatpush.bf16.msra.mxu0 0
      %254 = vmatpush.bf16.msra.mxu0 0
      %255 = vmatpush.bf16.msra.mxu0 0
      %256 = vmatpush.bf16.msra.mxu0 0
      %257 = vmatpush.bf16.msra.mxu0 0
      %258 = vmatpush.bf16.msra.mxu0 %v249
      %259 = vmatmul.bf16.gmra.mxu0 %v245
      %v260 = vpop.f32.mrf.mxu0
      %v261 = vadd.f32 0.0, %v260
      %v262 = vpop.f32.mrf.mxu0
      %263 = vdwg.mxu0
      %265 = vrot.lane.b32.xlu0 %v203, 120
      %v266 = vpop.permute.xlu0 %265
      %267 = vrot.lane.b32.xlu0 %v204, 120
      %v268 = vpop.permute.xlu0 %267
      %v270 = vsel %vm208, %v266, 0
      %v273 = vsel %vm208, %v268, 0
      %275 = vmatpush.bf16.xpose.msra.mxu0 0
      %276 = vmatpush.bf16.xpose.msra.mxu0 0
      %277 = vmatpush.bf16.xpose.msra.mxu0 0
      %278 = vmatpush.bf16.xpose.msra.mxu0 0
      %279 = vmatpush.bf16.xpose.msra.mxu0 0
      %280 = vmatpush.bf16.xpose.msra.mxu0 0
      %281 = vmatpush.bf16.xpose.msra.mxu0 0
      %282 = vmatpush.bf16.xpose.msra.mxu0 %v273
      %283 = vmatmul.bf16.gmra.mxu0 %v270
      %v284 = vpop.f32.mrf.mxu0
      %v285 = vadd.f32 %v206, %v284
      %v286 = vpop.f32.mrf.mxu0
      %287 = vdwg.mxu0
      %v288 = vsel %vm228, %v285, -inf
      %289 = vmax.xlane.f32.xlu0 %v288
      %v290 = vpop.xlane.xlu0 %289
      %v291 = vsub.f32 %v285, %v290
      %v292 = vmul.f32 %v291, 1.442695
      %v293 = vpow.pop %v292
      %v294 = vsel %vm228, %v293, 0.0
      %295 = vadd.xlane.f32.xlu0 %v294
      %v296 = vpop.xlane.xlu0 %295
      %v297 = vrcp.pop %v296
      %v298 = vmul.f32 %v293, %v297
      %v299 = vpack.c.bf16 %v298, %v298
      %300 = vrot.lane.b32.xlu0 %v204, 88
      %v301 = vpop.permute.xlu0 %300
      %v303 = vsel %vm208, %v299, 0
      %v306 = vsel %vm247, %v301, 0
      %308 = vmatpush.bf16.msra.mxu0 0
      %309 = vmatpush.bf16.msra.mxu0 0
      %310 = vmatpush.bf16.msra.mxu0 0
      %311 = vmatpush.bf16.msra.mxu0 0
      %312 = vmatpush.bf16.msra.mxu0 0
      %313 = vmatpush.bf16.msra.mxu0 0
      %314 = vmatpush.bf16.msra.mxu0 0
      %315 = vmatpush.bf16.msra.mxu0 %v306
      %316 = vmatmul.bf16.gmra.mxu0 %v303
      %v317 = vpop.f32.mrf.mxu0
      %v318 = vadd.f32 0.0, %v317
      %v319 = vpop.f32.mrf.mxu0
      %320 = vdwg.mxu0
      %321 = vrot.lane.b32.xlu0 %v203, 112
      %v322 = vpop.permute.xlu0 %321
      %323 = vrot.lane.b32.xlu0 %v204, 112
      %v324 = vpop.permute.xlu0 %323
      %v326 = vsel %vm208, %v322, 0
      %v329 = vsel %vm208, %v324, 0
      %331 = vmatpush.bf16.xpose.msra.mxu0 0
      %332 = vmatpush.bf16.xpose.msra.mxu0 0
      %333 = vmatpush.bf16.xpose.msra.mxu0 0
      %334 = vmatpush.bf16.xpose.msra.mxu0 0
      %335 = vmatpush.bf16.xpose.msra.mxu0 0
      %336 = vmatpush.bf16.xpose.msra.mxu0 0
      %337 = vmatpush.bf16.xpose.msra.mxu0 0
      %338 = vmatpush.bf16.xpose.msra.mxu0 %v329
      %339 = vmatmul.bf16.gmra.mxu0 %v326
      %v340 = vpop.f32.mrf.mxu0
      %v341 = vadd.f32 %v206, %v340
      %v342 = vpop.f32.mrf.mxu0
      %343 = vdwg.mxu0
      %v344 = vsel %vm228, %v341, -inf
      %345 = vmax.xlane.f32.xlu0 %v344
      %v346 = vpop.xlane.xlu0 %345
      %v347 = vsub.f32 %v341, %v346
      %v348 = vmul.f32 %v347, 1.442695
      %v349 = vpow.pop %v348
      %v350 = vsel %vm228, %v349, 0.0
      %351 = vadd.xlane.f32.xlu0 %v350
      %v352 = vpop.xlane.xlu0 %351
      %v353 = vrcp.pop %v352
      %v354 = vmul.f32 %v349, %v353
      %v355 = vpack.c.bf16 %v354, %v354
      %356 = vrot.lane.b32.xlu0 %v204, 80
      %v357 = vpop.permute.xlu0 %356
      %v359 = vsel %vm208, %v355, 0
      %v362 = vsel %vm247, %v357, 0
      %364 = vmatpush.bf16.msra.mxu0 0
      %365 = vmatpush.bf16.msra.mxu0 0
      %366 = vmatpush.bf16.msra.mxu0 0
      %367 = vmatpush.bf16.msra.mxu0 0
      %368 = vmatpush.bf16.msra.mxu0 0
      %369 = vmatpush.bf16.msra.mxu0 0
      %370 = vmatpush.bf16.msra.mxu0 0
      %371 = vmatpush.bf16.msra.mxu0 %v362
      %372 = vmatmul.bf16.gmra.mxu0 %v359
      %v373 = vpop.f32.mrf.mxu0
      %v374 = vadd.f32 0.0, %v373
      %v375 = vpop.f32.mrf.mxu0
      %376 = vdwg.mxu0
      %377 = vrot.lane.b32.xlu0 %v203, 104
      %v378 = vpop.permute.xlu0 %377
      %379 = vrot.lane.b32.xlu0 %v204, 104
      %v380 = vpop.permute.xlu0 %379
      %v382 = vsel %vm208, %v378, 0
      %v385 = vsel %vm208, %v380, 0
      %387 = vmatpush.bf16.xpose.msra.mxu0 0
      %388 = vmatpush.bf16.xpose.msra.mxu0 0
      %389 = vmatpush.bf16.xpose.msra.mxu0 0
      %390 = vmatpush.bf16.xpose.msra.mxu0 0
      %391 = vmatpush.bf16.xpose.msra.mxu0 0
      %392 = vmatpush.bf16.xpose.msra.mxu0 0
      %393 = vmatpush.bf16.xpose.msra.mxu0 0
      %394 = vmatpush.bf16.xpose.msra.mxu0 %v385
      %395 = vmatmul.bf16.gmra.mxu0 %v382
      %v396 = vpop.f32.mrf.mxu0
      %v397 = vadd.f32 %v206, %v396
      %v398 = vpop.f32.mrf.mxu0
      %399 = vdwg.mxu0
      %v400 = vsel %vm228, %v397, -inf
      %401 = vmax.xlane.f32.xlu0 %v400
      %v402 = vpop.xlane.xlu0 %401
      %v403 = vsub.f32 %v397, %v402
      %v404 = vmul.f32 %v403, 1.442695
      %v405 = vpow.pop %v404
      %v406 = vsel %vm228, %v405, 0.0
      %407 = vadd.xlane.f32.xlu0 %v406
      %v408 = vpop.xlane.xlu0 %407
      %v409 = vrcp.pop %v408
      %v410 = vmul.f32 %v405, %v409
      %v411 = vpack.c.bf16 %v410, %v410
      %412 = vrot.lane.b32.xlu0 %v204, 72
      %v413 = vpop.permute.xlu0 %412
      %v415 = vsel %vm208, %v411, 0
      %v418 = vsel %vm247, %v413, 0
      %420 = vmatpush.bf16.msra.mxu0 0
      %421 = vmatpush.bf16.msra.mxu0 0
      %422 = vmatpush.bf16.msra.mxu0 0
      %423 = vmatpush.bf16.msra.mxu0 0
      %424 = vmatpush.bf16.msra.mxu0 0
      %425 = vmatpush.bf16.msra.mxu0 0
      %426 = vmatpush.bf16.msra.mxu0 0
      %427 = vmatpush.bf16.msra.mxu0 %v418
      %428 = vmatmul.bf16.gmra.mxu0 %v415
      %v429 = vpop.f32.mrf.mxu0
      %v430 = vadd.f32 0.0, %v429
      %v431 = vpop.f32.mrf.mxu0
      %432 = vdwg.mxu0
      %434 = vrot.lane.b32.xlu0 %v318, 8
      %v435 = vpop.permute.xlu0 %434
      %438 = vrot.lane.b32.xlu0 %v374, 16
      %v439 = vpop.permute.xlu0 %438
      %442 = vrot.lane.b32.xlu0 %v430, 24
      %v443 = vpop.permute.xlu0 %442
      %v445 = vsel %vm208, %v261, %v435
      %vm446 = vcmask 130048
      %v447 = vsel %vm446, %v445, %v439
      %vm448 = vcmask 195584
      %v449 = vsel %vm448, %v447, %v443
      %vm450 = vcmask 257024
      %451 = vst.msk [vmem:[%s196] sm:$0xf] %vm450, %v449
      %p452 = scmp.lt.s32.totalorder %s14, 1
      %s453 = scalar_select %p452, %s14, 1
      %s454 = smul.addr %s453, 4
      %s455 = scalar_lea.vmem %s3, %s454
      // Predicated region
      $region33: #{decoder_forward.24} parent=31 // pred_check
        %p456 = pneg %p110
      $region34: #{decoder_forward.24} parent=31 // pred_check_branch
        %458 = sbr.rel (%p456) target = $region36
      $region35: #{decoder_forward.24} parent=31 // pred_region
        _
      $region36: #{decoder_forward.24} parent=31 // pred_fallthru
        _
    $region32: #{decoder_forward.24} parent=5 // pred_fallthru
      _
    %p459 = scmp.le.s32.totalorder 2, %s9
    // Predicated region
    $region37: #{decoder_forward.24} parent=5 // pred_check
      %p460 = pneg %p459
    $region38: #{decoder_forward.24} parent=5 // pred_check_branch
      %462 = sbr.rel (%p460) target = $region40
    $region39: #{decoder_forward.24} parent=5 // pred_region
      %s463 = ssub.s32 %s9, 2
      // Predicated region
      $region41: #{decoder_forward.24} parent=39 // pred_check
        %p464 = pneg %p116
      $region42: #{decoder_forward.24} parent=39 // pred_check_branch
        %466 = sbr.rel (%p464) target = $region44
      $region43: #{decoder_forward.24} parent=39 // pred_region
        %p467 = scmp.lt.s32.totalorder %s15, 1
        %s468 = scalar_select %p467, %s15, 1
        %s469 = smul.addr %s468, 4
        %s470 = scalar_lea.vmem %s3, %s469
      $region44: #{decoder_forward.24} parent=39 // pred_fallthru
        _
    $region40: #{decoder_forward.24} parent=5 // pred_fallthru
      _
  $region6: #{decoder_forward.24} parent=0 // loop_footer
    %s13 = sadd.s32 1, %s9
  $region7: #{decoder_forward.24} parent=0 // loop_footer_branch
    %8 = sbr.rel target = $region3
  $region8: #{decoder_forward.24} parent=0 // loop_exit
    _

// kernel: decoder_forward.27
$region0: #{decoder_forward.27}
  #allocation0 [shape = 'u32[]', space=smem, size = 0x4, offset = 0x4, fixed_abs, tag = 'smem constant byte address 0x4 - core index']
  #allocation1 [shape = 'u32[72,128]{1,0:T(1,128)}', space=vmem, size = 0x9000, scoped, tag = 'internal scratch']
  %s0 = inlined_call_operand.vmem [shape: f32[8,64], index: 0, kind: input, shape index: {}]
  %s1 = inlined_call_operand.vmem [shape: bf16[64,32], index: 1, kind: input, shape index: {}]
  %s2 = inlined_call_operand.vmem [shape: f32[1,32], index: 2, kind: input, shape index: {}]
  %s3 = inlined_call_operand.vmem [shape: f32[8,32], index: 3, kind: input, shape index: {}]
  %s4 = inlined_call_operand.vmem [shape: f32[1,32], index: 4, kind: input, shape index: {}]
  %s5 = inlined_call_operand.vmem [shape: f32[1,32], index: 5, kind: input, shape index: {}]
  %s6 = inlined_call_operand.vmem [shape: f32[8,32], index: 6, kind: output, shape index: {}]
  %s7 = sld [smem:[#allocation0]]
  $region42: #{decoder_forward.27} parent=0
    _
  %s9 = ssub.s32 1, %s7
  %s10 = scalar_select 0, %s9, %s7
  // Predicated region
  $region2: #{decoder_forward.27} parent=0 // pred_check
    _
  $region3: #{decoder_forward.27} parent=0 // pred_check_branch
    %12 = sbr.rel (0) target = $region5
  $region4: #{decoder_forward.27} parent=0 // pred_region
    _
  $region5: #{decoder_forward.27} parent=0 // pred_fallthru
    _
  // Predicated region
  $region6: #{decoder_forward.27} parent=0 // pred_check
    _
  $region7: #{decoder_forward.27} parent=0 // pred_check_branch
    %14 = sbr.rel (0) target = $region9
  $region8: #{decoder_forward.27} parent=0 // pred_region
    _
  $region9: #{decoder_forward.27} parent=0 // pred_fallthru
    _
  // Predicated region
  $region10: #{decoder_forward.27} parent=0 // pred_check
    _
  $region11: #{decoder_forward.27} parent=0 // pred_check_branch
    %16 = sbr.rel (0) target = $region13
  $region12: #{decoder_forward.27} parent=0 // pred_region
    _
  $region13: #{decoder_forward.27} parent=0 // pred_fallthru
    _
  // Predicated region
  $region14: #{decoder_forward.27} parent=0 // pred_check
    _
  $region15: #{decoder_forward.27} parent=0 // pred_check_branch
    %18 = sbr.rel (0) target = $region17
  $region16: #{decoder_forward.27} parent=0 // pred_region
    _
  $region17: #{decoder_forward.27} parent=0 // pred_fallthru
    _
  // Predicated region
  $region18: #{decoder_forward.27} parent=0 // pred_check
    _
  $region19: #{decoder_forward.27} parent=0 // pred_check_branch
    %20 = sbr.rel (0) target = $region21
  $region20: #{decoder_forward.27} parent=0 // pred_region
    _
  $region21: #{decoder_forward.27} parent=0 // pred_fallthru
    _
  // Predicated region
  $region22: #{decoder_forward.27} parent=0 // pred_check
    _
  $region23: #{decoder_forward.27} parent=0 // pred_check_branch
    %22 = sbr.rel (0) target = $region25
  $region24: #{decoder_forward.27} parent=0 // pred_region
    _
  $region25: #{decoder_forward.27} parent=0 // pred_fallthru
    _
  %p24 = scmp.eq.s32.totalorder 0, 0
  // Predicated region
  $region26: #{decoder_forward.27} parent=0 // pred_check
    %p25 = pneg %p24
  $region27: #{decoder_forward.27} parent=0 // pred_check_branch
    %27 = sbr.rel (%p25) target = $region29
  $region28: #{decoder_forward.27} parent=0 // pred_region
    %vm28 = vcmask 261120
    %29 = vst.msk [vmem:[%s6] sm:$0xff] %vm28, 0.0
  $region29: #{decoder_forward.27} parent=0 // pred_fallthru
    _
  %v30 = vld [vmem:[%s6] sm:$0xff]
  %v31 = vld [vmem:[%s0] sm:$0xff]
  %v32 = vpack.c.bf16 %v31, %v31
  %v33 = vld [vmem:[%s1] sm:$0xf]
  %v34 = vld [vmem:[%s1 + $0x4] sm:$0xf]
  %v35 = vld [vmem:[%s1 + $0x8] sm:$0xf]
  %v36 = vld [vmem:[%s1 + $0xc] sm:$0xf]
  %v37 = vld [vmem:[%s1 + $0x10] sm:$0xf]
  %v38 = vld [vmem:[%s1 + $0x14] sm:$0xf]
  %v39 = vld [vmem:[%s1 + $0x18] sm:$0xf]
  %v40 = vld [vmem:[%s1 + $0x1c] sm:$0xf]
  %v49 = vunpack.c.l.b16 %v33
  %v50 = vunpack.c.l.b16 %v34
  %v51 = vunpack.c.l.b16 %v35
  %v52 = vunpack.c.l.b16 %v36
  %v53 = vunpack.c.l.b16 %v37
  %v54 = vunpack.c.l.b16 %v38
  %v55 = vunpack.c.l.b16 %v39
  %v56 = vunpack.c.l.b16 %v40
  %v57 = vpack.c.b16 %v50, %v49
  %v58 = vpack.c.b16 %v52, %v51
  %v59 = vpack.c.b16 %v54, %v53
  %v60 = vpack.c.b16 %v56, %v55
  %vm65 = vcmask 523264
  %v67 = vsel %vm65, %v32, 0
  %69 = vmatpush.bf16.msra.mxu0 0
  %70 = vmatpush.bf16.msra.mxu0 0
  %71 = vmatpush.bf16.msra.mxu0 0
  %72 = vmatpush.bf16.msra.mxu0 0
  %73 = vmatpush.bf16.msra.mxu0 %v60
  %74 = vmatpush.bf16.msra.mxu0 %v59
  %75 = vmatpush.bf16.msra.mxu0 %v58
  %76 = vmatpush.bf16.msra.mxu0 %v57
  %77 = vmatmul.bf16.gmra.mxu0 %v67
  %v78 = vpop.f32.mrf.mxu0
  %v79 = vadd.f32 0.0, %v78
  %v80 = vpop.f32.mrf.mxu0
  %81 = vdwg.mxu0
  %v82 = vadd.f32 %v30, %v79
  %vm83 = vcmask 261120
  %84 = vst.msk [vmem:[%s6] sm:$0xff] %vm83, %v82
  // Predicated region
  $region30: #{decoder_forward.27} parent=0 // pred_check
    %p85 = pneg %p24
  $region31: #{decoder_forward.27} parent=0 // pred_check_branch
    %87 = sbr.rel (%p85) target = $region33
  $region32: #{decoder_forward.27} parent=0 // pred_region
    %v88 = vld [vmem:[%s6] sm:$0xff]
    %v89 = vld [vmem:[%s2] sm:$0x1]
    %v91 = vperm.slane %v89, 0
    %v93 = vadd.f32 %v88, %v91
    %v94 = vld [vmem:[%s3] sm:$0xff]
    %v95 = vadd.f32 %v93, %v94
    %v96 = vsel %vm83, %v95, 0.0
    %97 = vadd.xlane.f32.xlu0 %v96
    %v98 = vpop.xlane.xlu0 %97
    %v99 = vrcp.pop 32.0
    %v100 = vmul.f32 32.0, %v99
    %v101 = vsub.f32 1.0, %v100
    %v102 = vmul.f32 %v99, %v101
    %v103 = vadd.f32 %v99, %v102
    %vm104 = vweird.f32 %v99
    %v105 = vsel %vm104, %v99, %v103
    %v106 = vmul.f32 %v98, %v105
    %v107 = vsub.f32 %v95, %v106
    %v108 = vmul.f32 %v107, %v107
    %v109 = vsel %vm83, %v108, 0.0
    %110 = vadd.xlane.f32.xlu0 %v109
    %v111 = vpop.xlane.xlu0 %110
    %v112 = vmul.f32 %v111, %v105
    %v113 = vadd.f32 %v112, 1e-05
    %v114 = vrsqrt.pop %v113
    %v115 = vmul.f32 %v114, %v113
    %v116 = vmul.f32 %v115, %v114
    %v117 = vmul.f32 0.5, %v116
    %v118 = vsub.f32 1.5, %v117
    %v119 = vmul.f32 %v114, %v118
    %vm120 = vweird.f32 %v113
    %vm121 = vweird.f32 %v114
    %vm122 = vmor %vm120, %vm121
    %v123 = vsel %vm122, %v114, %v119
    %v124 = vmul.f32 %v107, %v123
    %v125 = vld [vmem:[%s4] sm:$0x1]
    %v127 = vperm.slane %v125, 0
    %v129 = vmul.f32 %v124, %v127
    %v130 = vld [vmem:[%s5] sm:$0x1]
    %v132 = vperm.slane %v130, 0
    %v134 = vadd.f32 %v129, %v132
    %135 = vst.msk [vmem:[%s6] sm:$0xff] %vm83, %v134
  $region33: #{decoder_forward.27} parent=0 // pred_fallthru
    _
  // Predicated region
  $region34: #{decoder_forward.27} parent=0 // pred_check
    _
  $region35: #{decoder_forward.27} parent=0 // pred_check_branch
    %137 = sbr.rel (0) target = $region37
  $region36: #{decoder_forward.27} parent=0 // pred_region
    _
  $region37: #{decoder_forward.27} parent=0 // pred_fallthru
    _
  // Predicated region
  $region38: #{decoder_forward.27} parent=0 // pred_check
    _
  $region39: #{decoder_forward.27} parent=0 // pred_check_branch
    %139 = sbr.rel (0) target = $region41
  $region40: #{decoder_forward.27} parent=0 // pred_region
    _
  $region41: #{decoder_forward.27} parent=0 // pred_fallthru
    _

// kernel: decoder_forward.37
$region0: #{decoder_forward.37}
  #allocation0 [shape = 'u32[]', space=smem, size = 0x4, offset = 0x4, fixed_abs, tag = 'smem constant byte address 0x4 - core index']
  #allocation1 [shape = 'u32[72,128]{1,0:T(1,128)}', space=vmem, size = 0x9000, scoped, tag = 'internal scratch']
  %s0 = inlined_call_operand.vmem [shape: f32[8,32], index: 0, kind: input, shape index: {}]
  %s1 = inlined_call_operand.vmem [shape: bf16[32,128], index: 1, kind: input, shape index: {}]
  %s2 = inlined_call_operand.vmem [shape: f32[1,128], index: 2, kind: input, shape index: {}]
  %s3 = inlined_call_operand.hbm [shape: f32[8,128], index: 3, kind: output, shape index: {}]
  %s4 = sld [smem:[#allocation0]]
  $region30: #{decoder_forward.37} parent=0
    _
  %s6 = ssub.s32 1, %s4
  %s7 = scalar_select 0, %s6, %s4
  $region1: #{decoder_forward.37} parent=0
    #allocation2 [shape = 'u8[4096]{0}', space=vmem, size = 0x1000, scoped, tag = 'output window, operand 0, single buffered']
    #allocation3 [shape = 's32[1]{0}', space=sflag, size = 0x4, scoped, tag = 'scoped memory for decoder_forward.37']
    %8 = vsyncpa [#allocation3], 0
    // Predicated region
    $region2: #{decoder_forward.37} parent=1 // pred_check
      _
    $region3: #{decoder_forward.37} parent=1 // pred_check_branch
      %10 = sbr.rel (0) target = $region5
    $region4: #{decoder_forward.37} parent=1 // pred_region
      _
    $region5: #{decoder_forward.37} parent=1 // pred_fallthru
      _
    // Predicated region
    $region6: #{decoder_forward.37} parent=1 // pred_check
      _
    $region7: #{decoder_forward.37} parent=1 // pred_check_branch
      %12 = sbr.rel (0) target = $region9
    $region8: #{decoder_forward.37} parent=1 // pred_region
      _
    $region9: #{decoder_forward.37} parent=1 // pred_fallthru
      _
    // Predicated region
    $region10: #{decoder_forward.37} parent=1 // pred_check
      _
    $region11: #{decoder_forward.37} parent=1 // pred_check_branch
      %14 = sbr.rel (0) target = $region13
    $region12: #{decoder_forward.37} parent=1 // pred_region
      _
    $region13: #{decoder_forward.37} parent=1 // pred_fallthru
      _
    %p16 = scmp.eq.s32.totalorder 0, 0
    // Predicated region
    $region14: #{decoder_forward.37} parent=1 // pred_check
      %p17 = pneg %p16
    $region15: #{decoder_forward.37} parent=1 // pred_check_branch
      %19 = sbr.rel (%p17) target = $region17
    $region16: #{decoder_forward.37} parent=1 // pred_region
      %20 = vst [vmem:[#allocation2] sm:$0xff] 0.0
    $region17: #{decoder_forward.37} parent=1 // pred_fallthru
      _
    %v21 = vld [vmem:[#allocation2] sm:$0xff]
    %v22 = vld [vmem:[%s0] sm:$0xff]
    %v23 = vpack.c.bf16 %v22, %v22
    %v24 = vld [vmem:[%s1] sm:$0xf]
    %v25 = vld [vmem:[%s1 + $0x4] sm:$0xf]
    %v26 = vld [vmem:[%s1 + $0x8] sm:$0xf]
    %v27 = vld [vmem:[%s1 + $0xc] sm:$0xf]
    %v32 = vunpack.c.l.b16 %v24
    %v33 = vunpack.c.l.b16 %v25
    %v34 = vunpack.c.l.b16 %v26
    %v35 = vunpack.c.l.b16 %v27
    %v36 = vpack.c.b16 %v33, %v32
    %v37 = vpack.c.b16 %v35, %v34
    %vm40 = vcmask 261120
    %v42 = vsel %vm40, %v23, 0
    %44 = vmatpush.bf16.msra.mxu0 0
    %45 = vmatpush.bf16.msra.mxu0 0
    %46 = vmatpush.bf16.msra.mxu0 0
    %47 = vmatpush.bf16.msra.mxu0 0
    %48 = vmatpush.bf16.msra.mxu0 0
    %49 = vmatpush.bf16.msra.mxu0 0
    %50 = vmatpush.bf16.msra.mxu0 %v37
    %51 = vmatpush.bf16.msra.mxu0 %v36
    %52 = vmatmul.bf16.gmra.mxu0 %v42
    %v53 = vpop.f32.mrf.mxu0
    %v54 = vadd.f32 0.0, %v53
    %v55 = vpop.f32.mrf.mxu0
    %56 = vdwg.mxu0
    %v57 = vadd.f32 %v21, %v54
    %58 = vst [vmem:[#allocation2] sm:$0xff] %v57
    // Predicated region
    $region18: #{decoder_forward.37} parent=1 // pred_check
      %p59 = pneg %p16
    $region19: #{decoder_forward.37} parent=1 // pred_check_branch
      %61 = sbr.rel (%p59) target = $region21
    $region20: #{decoder_forward.37} parent=1 // pred_region
      %v62 = vld [vmem:[#allocation2] sm:$0xff]
      %v63 = vld [vmem:[%s2] sm:$0x1]
      %v65 = vperm.slane %v63, 0
      %v67 = vadd.f32 %v62, %v65
      %68 = vst [vmem:[#allocation2] sm:$0xff] %v67
    $region21: #{decoder_forward.37} parent=1 // pred_fallthru
      _
    // Predicated region
    $region22: #{decoder_forward.37} parent=1 // pred_check
      _
    $region23: #{decoder_forward.37} parent=1 // pred_check_branch
      %70 = sbr.rel (0) target = $region25
    $region24: #{decoder_forward.37} parent=1 // pred_region
      %72 = vsyncadd [#allocation3], 0
      %s74 = sshll.u32 [#allocation2], 4
      %s75 = int_to_ptr.vmem [resolvable:$true] %s74
      %s76 = sshll.u32 %s3, 4
      %s77 = int_to_ptr.hbm [resolvable:$true] %s76
      %79 = dma.vmem_to_hbm [thread:$0]  %s75, 128, %s77, [#allocation3]
    $region25: #{decoder_forward.37} parent=1 // pred_fallthru
      _
    // Predicated region
    $region26: #{decoder_forward.37} parent=1 // pred_check
      _
    $region27: #{decoder_forward.37} parent=1 // pred_check_branch
      %81 = sbr.rel (0) target = $region29
    $region28: #{decoder_forward.37} parent=1 // pred_region
      %83 = dma.done [#allocation3], 128
    $region29: #{decoder_forward.37} parent=1 // pred_fallthru
      _
    %84 = vsyncpa [#allocation3], 1

</llo_original>
